<compile_context>
chip_gen: v7x
topology: tpu7x:2x2x1
jax: 0.10.0
libtpu: 0.0.40
codegen_flags: <defaults>
</compile_context>

<pallas_src>
import math

import jax
import jax.numpy as jnp
from jax import lax
from jax.experimental import pallas as pl
from jax.experimental.pallas import tpu as pltpu


# ----------------------------- helpers -------------------------------------


def _round_up(x, m):
    return ((x + m - 1) // m) * m


def _pad_2d(a, rows, cols):
    out = jnp.zeros((rows, cols), a.dtype)
    return out.at[: a.shape[0], : a.shape[1]].set(a)


def _pad_row(v, cols):
    out = jnp.zeros((1, cols), v.dtype)
    return out.at[0, : v.shape[0]].set(v)


# ----------------------------- kernel --------------------------------------


def _ppo_bptt_kernel(
    live_ref,     # (T, B, 1) f32   1.0 iff t <  lengths[b]
    last_ref,     # (T, B, 1) f32   1.0 iff t == lengths[b]-1
    state_ref,    # (T, B, D) f32   time-major state
    h0_ref,       # (B, Hp)  f32    initial hidden (zero-padded)
    w1_ref,       # (D, Fp)  f32    h1_o           (matmul-ready, padded)
    b1_ref,       # (1, Fp)
    wih_ref,      # (Fp, Hp)        RNN input->hidden
    brnn_ref,     # (1, Hp)         bih + bhh (pre-folded)
    whh_ref,      # (Hp, Hp)        RNN hidden->hidden
    w1p_ref,      # (D, Fp)         h1_o_post_rnn
    b1p_ref,      # (1, Fp)
    w3a_ref,      # (Fp, Ap)        h3 (feature_sa part)
    w3b_ref,      # (Hp, Ap)        h3 (features_rnn part)
    b3_ref,       # (1, Ap)
    a_ref,        # (B, Ap)  out: action head (padded)
    nh_ref,       # (B, Hp)  out: next hidden (padded)
    pre_sc,       # (T, B, Hp) VMEM scratch: hoisted input projection
    live_sc,      # (T, B, Hp) VMEM scratch: full-width live mask
):
    T, B, D = state_ref.shape
    Hp = whh_ref.shape[0]

    state = state_ref[...]                                      # (T, B, D)

    # ---- Hoisted hidden-independent projection: one M = T*B batched matmul pair.
    x = state.reshape(T * B, D)                                 # lane-dense single slab
    inp = jnp.maximum(
        jnp.dot(x, w1_ref[...], preferred_element_type=jnp.float32) + b1_ref[...],
        0.0,
    )                                                           # (T*B, Fp)
    pre_sc[...] = (
        jnp.dot(inp, wih_ref[...], preferred_element_type=jnp.float32)
        + brnn_ref[...]
    ).reshape(T, B, Hp)

    # ---- Full-width live mask built once (no per-step compare / broadcast).
    live_sc[...] = jnp.broadcast_to(live_ref[...], (T, B, Hp))

    # ---- last_state = state[b, lengths[b]-1] as a masked reduction (hoisted).
    #      Valid for lengths in 1..T (matches reference behaviour there).
    last_state = jnp.sum(last_ref[...] * state, axis=0)         # (B, D)

    whh = whh_ref[...]
    h0 = h0_ref[...]

    # ---- Serial recurrence: only the h-dependent matmul remains on the path.
    def step(t, h_prev):
        h_new = jnp.tanh(
            pre_sc[t] + jnp.dot(h_prev, whh, preferred_element_type=jnp.float32)
        )
        # live mask in {0,1}: h = live*h_new + (1-live)*h_prev
        return h_prev + live_sc[t] * (h_new - h_prev)

    h_final = lax.fori_loop(0, T, step, h0, unroll=min(T, 8))

    # ---- Head: feature_sa = relu(h1_o_post_rnn(last_state)); a = h3(concat(...)).
    feat_sa = jnp.maximum(
        jnp.dot(last_state, w1p_ref[...], preferred_element_type=jnp.float32)
        + b1p_ref[...],
        0.0,
    )
    a_ref[...] = (
        jnp.dot(feat_sa, w3a_ref[...], preferred_element_type=jnp.float32)
        + jnp.dot(h_final, w3b_ref[...], preferred_element_type=jnp.float32)
        + b3_ref[...]
    )
    nh_ref[...] = h_final


def _ppo_bptt_forward(live_f, last_f, state_tm, h0, p):
    """live_f/last_f:(T,B,1) f32, state_tm:(T,B,D) f32, h0:(B,Hp) f32, p: padded params."""
    T, B, D = state_tm.shape
    Hp = p["whh"].shape[0]
    Ap = p["b3"].shape[1]

    operands = (
        live_f, last_f, state_tm, h0,
        p["w1"], p["b1"], p["wih"], p["brnn"], p["whh"],
        p["w1p"], p["b1p"], p["w3a"], p["w3b"], p["b3"],
    )
    vmem_specs = [
        pl.BlockSpec(memory_space=pltpu.MemorySpace.VMEM) for _ in operands
    ]
    return pl.pallas_call(
        _ppo_bptt_kernel,
        out_shape=(
            jax.ShapeDtypeStruct((B, Ap), jnp.float32),
            jax.ShapeDtypeStruct((B, Hp), jnp.float32),
        ),
        in_specs=vmem_specs,
        out_specs=(
            pl.BlockSpec(memory_space=pltpu.MemorySpace.VMEM),
            pl.BlockSpec(memory_space=pltpu.MemorySpace.VMEM),
        ),
        scratch_shapes=[
            pltpu.VMEM((T, B, Hp), jnp.float32),   # pre-projection, all T steps
            pltpu.VMEM((T, B, Hp), jnp.float32),   # full-width live mask
        ],
        # Headroom for longer horizons (v5e's default scoped-VMEM limit is 16 MiB);
        # tiny here, but explicit per perf review.
        compiler_params=pltpu.CompilerParams(vmem_limit_bytes=32 * 1024 * 1024),
    )(*operands)


# ----------------------------- module --------------------------------------


class PPOActorBPTTNetworkPallas:
    def __init__(self, input_shape, output_shape, n_features, dim_env_state,
                 rnn_type, n_hidden_features, num_hidden_layers=1, *, key):
        if rnn_type != "vanilla":
            raise NotImplementedError("only rnn_type='vanilla' is ported")
        if num_hidden_layers != 1:
            raise NotImplementedError("only num_hidden_layers=1 is ported")

        dim_state = input_shape[0]
        dim_action = output_shape[0]
        # The reference forward applies h1_o (in_features=dim_env_state) to the
        # full state, so the shapes must agree.
        assert dim_env_state == dim_state

        D, F, H, A = dim_state, n_features, n_hidden_features, dim_action
        self._D, self._F, self._H, self._A = D, F, H, A
        self._L = num_hidden_layers
        self._Fp = _round_up(F, 128)
        self._Hp = _round_up(H, 128)
        self._Ap = _round_up(A, 128)

        gain = math.sqrt(2.0) * 0.05  # calculate_gain('relu') * 0.05
        ks = jax.random.split(key, 10)

        def xavier(k, fan_out, fan_in):
            a = gain * math.sqrt(6.0 / (fan_in + fan_out))
            return jax.random.uniform(k, (fan_out, fan_in), minval=-a, maxval=a,
                                      dtype=jnp.float32)

        def unif(k, shape, bound):
            return jax.random.uniform(k, shape, minval=-bound, maxval=bound,
                                      dtype=jnp.float32)

        # PyTorch-layout raw parameters (kept only for the pure-JAX reference).
        w1 = xavier(ks[0], F, D)
        b1 = unif(ks[1], (F,), 1.0 / math.sqrt(D))
        w1p = xavier(ks[2], F, D)
        b1p = unif(ks[3], (F,), 1.0 / math.sqrt(D))
        s = 1.0 / math.sqrt(H)                      # nn.RNN default init
        wih = unif(ks[4], (H, F), s)
        whh = unif(ks[5], (H, H), s)
        bih = unif(ks[6], (H,), s)
        bhh = unif(ks[7], (H,), s)
        w3 = xavier(ks[8], A, F + H)
        b3 = unif(ks[9], (A,), 1.0 / math.sqrt(F + H))
        self._raw = dict(w1=w1, b1=b1, w1p=w1p, b1p=b1p, wih=wih, whh=whh,
                         bih=bih, bhh=bhh, w3=w3, b3=b3)

        # Matmul-ready (transposed) and 128-lane padded parameters, built once.
        # Zero padding is load-bearing: padded lanes stay exactly 0 through
        # relu/tanh so the padded outputs slice back correctly.
        Fp, Hp, Ap = self._Fp, self._Hp, self._Ap
        self._p = dict(
            w1=_pad_2d(w1.T, D, Fp), b1=_pad_row(b1, Fp),
            w1p=_pad_2d(w1p.T, D, Fp), b1p=_pad_row(b1p, Fp),
            wih=_pad_2d(wih.T, Fp, Hp),
            brnn=_pad_row(bih + bhh, Hp),            # bih + bhh folded once
            whh=_pad_2d(whh.T, Hp, Hp),
            w3a=_pad_2d(w3[:, :F].T, Fp, Ap),
            w3b=_pad_2d(w3[:, F:].T, Hp, Ap),
            b3=_pad_row(b3, Ap),
        )

        # JIT the wrapper so the (tiny) layout plumbing fuses around the kernel.
        self._forward = jax.jit(self._forward_impl)

    # -- Pallas forward ------------------------------------------------------

    def _forward_impl(self, state, policy_state, lengths):
        state = jnp.asarray(state, jnp.float32)               # (B, T, D)
        B, T, D = state.shape
        lengths = jnp.asarray(lengths, jnp.int32).reshape(B)  # valid range 1..T
        h0_raw = jnp.asarray(policy_state, jnp.float32).reshape(B, self._L, self._H)[:, 0, :]
        h0 = jnp.zeros((B, self._Hp), jnp.float32).at[:, : self._H].set(h0_raw)

        # Time-major state. Negligible (KB-scale) transpose at these shapes;
        # TODO(synk): fold into the kernel via a T-grid index_map for real rollout sizes.
        state_tm = jnp.swapaxes(state, 0, 1)                  # (T, B, D)

        # Precomputed packed-sequence masks (lengths never enters the kernel).
        t_iota = jnp.arange(T, dtype=jnp.int32)[:, None]                      # (T, 1)
        live_f = (t_iota < lengths[None, :]).astype(jnp.float32)[:, :, None]  # (T, B, 1)
        last_f = (t_iota == (lengths[None, :] - 1)).astype(jnp.float32)[:, :, None]

        a_pad, nh_pad = _ppo_bptt_forward(live_f, last_f, state_tm, h0, self._p)

        a = a_pad[:, : self._A]                               # (B, A)
        next_hidden = nh_pad[:, : self._H][:, None, :]        # (B, L=1, H)
        return a, next_hidden

    def __call__(self, state, policy_state, lengths):
        return self._forward(state, policy_state, lengths)

    # -- pure-JAX reference (mirrors the PyTorch forward) ---------------------

    def reference_forward(self, state, policy_state, lengths):
        p = self._raw
        state = jnp.asarray(state, jnp.float32)
        lengths = jnp.asarray(lengths, jnp.int32)
        B, T, D = state.shape
        h = jnp.asarray(policy_state, jnp.float32).reshape(B, self._L, self._H)[:, 0, :]
        for t in range(T):
            x_t = state[:, t, :]
            inp = jnp.maximum(x_t @ p["w1"].T + p["b1"], 0.0)
            h_new = jnp.tanh(inp @ p["wih"].T + p["bih"] + h @ p["whh"].T + p["bhh"])
            h = jnp.where((t < lengths)[:, None], h_new, h)
        last_state = jnp.take_along_axis(
            state, (lengths - 1)[:, None, None], axis=1
        )[:, 0, :]
        feat_sa = jnp.maximum(last_state @ p["w1p"].T + p["b1p"], 0.0)
        a = jnp.concatenate([feat_sa, h], axis=1) @ p["w3"].T + p["b3"]
        return a, h[:, None, :]


# ----------------------------- demo ----------------------------------------


if __name__ == "__main__":
    key = jax.random.PRNGKey(0)
    k_params, k_state, k_h0, k_len = jax.random.split(key, 4)

    B, T = 8, 8
    dim_state = dim_env_state = 12
    n_features = 32
    n_hidden_features = 32
    dim_action = 6

    net = PPOActorBPTTNetworkPallas(
        input_shape=(dim_state,),
        output_shape=(dim_action,),
        n_features=n_features,
        dim_env_state=dim_env_state,
        rnn_type="vanilla",
        n_hidden_features=n_hidden_features,
        num_hidden_layers=1,
        key=k_params,
    )

    state = jax.random.normal(k_state, (B, T, dim_state), dtype=jnp.float32)
    policy_state = 0.1 * jax.random.normal(k_h0, (B, n_hidden_features), dtype=jnp.float32)
    lengths = jax.random.randint(k_len, (B,), 1, T + 1)   # valid range 1..T

    a, next_hidden = net(state, policy_state, lengths)
    jax.block_until_ready((a, next_hidden))
    assert a.shape == (B, dim_action)
    assert next_hidden.shape == (B, 1, n_hidden_features)

    a_ref, nh_ref = net.reference_forward(state, policy_state, lengths)
    assert bool(jnp.allclose(a, a_ref, atol=1e-3, rtol=1e-3)), "action head mismatch"
    assert bool(jnp.allclose(next_hidden, nh_ref, atol=1e-3, rtol=1e-3)), "hidden mismatch"

    print("KERNEL_OK")
</pallas_src>

<mosaic_0001>
module attributes {stable_mosaic.version = 11 : i64} {
  func.func @_ppo_bptt_kernel(%arg0: memref<8x8x1xf32, #tpu.memory_space<vmem>>, %arg1: memref<8x8x1xf32, #tpu.memory_space<vmem>>, %arg2: memref<8x8x12xf32, #tpu.memory_space<vmem>>, %arg3: memref<8x128xf32, #tpu.memory_space<vmem>>, %arg4: memref<12x128xf32, #tpu.memory_space<vmem>>, %arg5: memref<1x128xf32, #tpu.memory_space<vmem>>, %arg6: memref<128x128xf32, #tpu.memory_space<vmem>>, %arg7: memref<1x128xf32, #tpu.memory_space<vmem>>, %arg8: memref<128x128xf32, #tpu.memory_space<vmem>>, %arg9: memref<12x128xf32, #tpu.memory_space<vmem>>, %arg10: memref<1x128xf32, #tpu.memory_space<vmem>>, %arg11: memref<128x128xf32, #tpu.memory_space<vmem>>, %arg12: memref<128x128xf32, #tpu.memory_space<vmem>>, %arg13: memref<1x128xf32, #tpu.memory_space<vmem>>, %arg14: memref<8x128xf32, #tpu.memory_space<vmem>>, %arg15: memref<8x128xf32, #tpu.memory_space<vmem>>, %arg16: memref<8x8x128xf32, #tpu.memory_space<vmem>>, %arg17: memref<8x8x128xf32, #tpu.memory_space<vmem>>) attributes {dimension_semantics = [], scalar_prefetch = 0 : i64, scratch_operands = 2 : i64, tpu.core_type = #tpu.core_type<tc>} {
    %c0 = arith.constant 0 : index
    %c0_0 = arith.constant 0 : index
    %c0_1 = arith.constant 0 : index
    %0 = vector.load %arg2[%c0, %c0_0, %c0_1] : memref<8x8x12xf32, #tpu.memory_space<vmem>>, vector<8x8x12xf32>
    %1 = vector.shape_cast %0 : vector<8x8x12xf32> to vector<64x12xf32>
    %c0_2 = arith.constant 0 : index
    %c0_3 = arith.constant 0 : index
    %2 = vector.load %arg4[%c0_2, %c0_3] : memref<12x128xf32, #tpu.memory_space<vmem>>, vector<12x128xf32>
    %cst = arith.constant dense<0.000000e+00> : vector<64x128xf32>
    %3 = tpu.matmul %1, %2, %cst {dimension_numbers = #tpu.dot_dimension_numbers<[1], [0], [0], [1], [0, 0, 1, 1], [], []>} : vector<64x12xf32>, vector<12x128xf32>, vector<64x128xf32> -> vector<64x128xf32>
    %c0_4 = arith.constant 0 : index
    %c0_5 = arith.constant 0 : index
    %4 = vector.load %arg5[%c0_4, %c0_5] : memref<1x128xf32, #tpu.memory_space<vmem>>, vector<1x128xf32>
    %5 = vector.broadcast %4 : vector<1x128xf32> to vector<64x128xf32>
    %6 = arith.addf %3, %5 : vector<64x128xf32>
    %cst_6 = arith.constant 0.000000e+00 : f32
    %7 = vector.broadcast %cst_6 : f32 to vector<64x128xf32>
    %8 = arith.maximumf %6, %7 : vector<64x128xf32>
    %c0_7 = arith.constant 0 : index
    %c0_8 = arith.constant 0 : index
    %9 = vector.load %arg6[%c0_7, %c0_8] : memref<128x128xf32, #tpu.memory_space<vmem>>, vector<128x128xf32>
    %cst_9 = arith.constant dense<0.000000e+00> : vector<64x128xf32>
    %10 = tpu.matmul %8, %9, %cst_9 {dimension_numbers = #tpu.dot_dimension_numbers<[1], [0], [0], [1], [0, 0, 1, 1], [], []>} : vector<64x128xf32>, vector<128x128xf32>, vector<64x128xf32> -> vector<64x128xf32>
    %c0_10 = arith.constant 0 : index
    %c0_11 = arith.constant 0 : index
    %11 = vector.load %arg7[%c0_10, %c0_11] : memref<1x128xf32, #tpu.memory_space<vmem>>, vector<1x128xf32>
    %12 = vector.broadcast %11 : vector<1x128xf32> to vector<64x128xf32>
    %13 = arith.addf %10, %12 : vector<64x128xf32>
    %14 = vector.shape_cast %13 : vector<64x128xf32> to vector<8x8x128xf32>
    %c0_12 = arith.constant 0 : index
    %c0_13 = arith.constant 0 : index
    %c0_14 = arith.constant 0 : index
    %15 = vector.load %arg16[%c0_12, %c0_13, %c0_14] : memref<8x8x128xf32, #tpu.memory_space<vmem>>, vector<8x8x128xf32>
    tpu.vector_store %arg16[%c0_12, %c0_13, %c0_14], %14 {strides = array<i32>} : memref<8x8x128xf32, #tpu.memory_space<vmem>>, vector<8x8x128xf32>,
    %c0_15 = arith.constant 0 : index
    %c0_16 = arith.constant 0 : index
    %c0_17 = arith.constant 0 : index
    %16 = vector.load %arg0[%c0_15, %c0_16, %c0_17] : memref<8x8x1xf32, #tpu.memory_space<vmem>>, vector<8x8x1xf32>
    %17 = vector.shape_cast %16 : vector<8x8x1xf32> to vector<8x8x1xf32>
    %18 = vector.broadcast %17 : vector<8x8x1xf32> to vector<8x8x128xf32>
    %c0_18 = arith.constant 0 : index
    %c0_19 = arith.constant 0 : index
    %c0_20 = arith.constant 0 : index
    %19 = vector.load %arg17[%c0_18, %c0_19, %c0_20] : memref<8x8x128xf32, #tpu.memory_space<vmem>>, vector<8x8x128xf32>
    tpu.vector_store %arg17[%c0_18, %c0_19, %c0_20], %18 {strides = array<i32>} : memref<8x8x128xf32, #tpu.memory_space<vmem>>, vector<8x8x128xf32>,
    %c0_21 = arith.constant 0 : index
    %c0_22 = arith.constant 0 : index
    %c0_23 = arith.constant 0 : index
    %20 = vector.load %arg1[%c0_21, %c0_22, %c0_23] : memref<8x8x1xf32, #tpu.memory_space<vmem>>, vector<8x8x1xf32>
    %21 = vector.broadcast %20 : vector<8x8x1xf32> to vector<8x8x12xf32>
    %22 = arith.mulf %21, %0 : vector<8x8x12xf32>
    %cst_24 = arith.constant dense<0.000000e+00> : vector<8x12xf32>
    %23 = vector.multi_reduction <add>, %22, %cst_24 [0] : vector<8x8x12xf32> to vector<8x12xf32>
    %c0_25 = arith.constant 0 : index
    %c0_26 = arith.constant 0 : index
    %24 = vector.load %arg8[%c0_25, %c0_26] : memref<128x128xf32, #tpu.memory_space<vmem>>, vector<128x128xf32>
    %c0_27 = arith.constant 0 : index
    %c0_28 = arith.constant 0 : index
    %25 = vector.load %arg3[%c0_27, %c0_28] : memref<8x128xf32, #tpu.memory_space<vmem>>, vector<8x128xf32>
    %c0_i32 = arith.constant 0 : i32
    %26 = arith.index_cast %c0_i32 : i32 to index
    %c0_29 = arith.constant 0 : index
    %c0_30 = arith.constant 0 : index
    %27 = vector.load %arg16[%26, %c0_29, %c0_30] : memref<8x8x128xf32, #tpu.memory_space<vmem>>, vector<1x8x128xf32>
    %28 = vector.shape_cast %27 : vector<1x8x128xf32> to vector<8x128xf32>
    %cst_31 = arith.constant dense<0.000000e+00> : vector<8x128xf32>
    %29 = tpu.matmul %25, %24, %cst_31 {dimension_numbers = #tpu.dot_dimension_numbers<[1], [0], [0], [1], [0, 0, 1, 1], [], []>} : vector<8x128xf32>, vector<128x128xf32>, vector<8x128xf32> -> vector<8x128xf32>
    %30 = arith.addf %28, %29 : vector<8x128xf32>
    %31 = math.tanh %30 : vector<8x128xf32>
    %32 = arith.index_cast %c0_i32 : i32 to index
    %c0_32 = arith.constant 0 : index
    %c0_33 = arith.constant 0 : index
    %33 = vector.load %arg17[%32, %c0_32, %c0_33] : memref<8x8x128xf32, #tpu.memory_space<vmem>>, vector<1x8x128xf32>
    %34 = vector.shape_cast %33 : vector<1x8x128xf32> to vector<8x128xf32>
    %35 = arith.subf %31, %25 : vector<8x128xf32>
    %36 = arith.mulf %34, %35 : vector<8x128xf32>
    %37 = arith.addf %25, %36 : vector<8x128xf32>
    %c1_i32 = arith.constant 1 : i32
    %38 = arith.index_cast %c1_i32 : i32 to index
    %c0_34 = arith.constant 0 : index
    %c0_35 = arith.constant 0 : index
    %39 = vector.load %arg16[%38, %c0_34, %c0_35] : memref<8x8x128xf32, #tpu.memory_space<vmem>>, vector<1x8x128xf32>
    %40 = vector.shape_cast %39 : vector<1x8x128xf32> to vector<8x128xf32>
    %cst_36 = arith.constant dense<0.000000e+00> : vector<8x128xf32>
    %41 = tpu.matmul %37, %24, %cst_36 {dimension_numbers = #tpu.dot_dimension_numbers<[1], [0], [0], [1], [0, 0, 1, 1], [], []>} : vector<8x128xf32>, vector<128x128xf32>, vector<8x128xf32> -> vector<8x128xf32>
    %42 = arith.addf %40, %41 : vector<8x128xf32>
    %43 = math.tanh %42 : vector<8x128xf32>
    %44 = arith.index_cast %c1_i32 : i32 to index
    %c0_37 = arith.constant 0 : index
    %c0_38 = arith.constant 0 : index
    %45 = vector.load %arg17[%44, %c0_37, %c0_38] : memref<8x8x128xf32, #tpu.memory_space<vmem>>, vector<1x8x128xf32>
    %46 = vector.shape_cast %45 : vector<1x8x128xf32> to vector<8x128xf32>
    %47 = arith.subf %43, %37 : vector<8x128xf32>
    %48 = arith.mulf %46, %47 : vector<8x128xf32>
    %49 = arith.addf %37, %48 : vector<8x128xf32>
    %c2_i32 = arith.constant 2 : i32
    %50 = arith.index_cast %c2_i32 : i32 to index
    %c0_39 = arith.constant 0 : index
    %c0_40 = arith.constant 0 : index
    %51 = vector.load %arg16[%50, %c0_39, %c0_40] : memref<8x8x128xf32, #tpu.memory_space<vmem>>, vector<1x8x128xf32>
    %52 = vector.shape_cast %51 : vector<1x8x128xf32> to vector<8x128xf32>
    %cst_41 = arith.constant dense<0.000000e+00> : vector<8x128xf32>
    %53 = tpu.matmul %49, %24, %cst_41 {dimension_numbers = #tpu.dot_dimension_numbers<[1], [0], [0], [1], [0, 0, 1, 1], [], []>} : vector<8x128xf32>, vector<128x128xf32>, vector<8x128xf32> -> vector<8x128xf32>
    %54 = arith.addf %52, %53 : vector<8x128xf32>
    %55 = math.tanh %54 : vector<8x128xf32>
    %56 = arith.index_cast %c2_i32 : i32 to index
    %c0_42 = arith.constant 0 : index
    %c0_43 = arith.constant 0 : index
    %57 = vector.load %arg17[%56, %c0_42, %c0_43] : memref<8x8x128xf32, #tpu.memory_space<vmem>>, vector<1x8x128xf32>
    %58 = vector.shape_cast %57 : vector<1x8x128xf32> to vector<8x128xf32>
    %59 = arith.subf %55, %49 : vector<8x128xf32>
    %60 = arith.mulf %58, %59 : vector<8x128xf32>
    %61 = arith.addf %49, %60 : vector<8x128xf32>
    %c3_i32 = arith.constant 3 : i32
    %62 = arith.index_cast %c3_i32 : i32 to index
    %c0_44 = arith.constant 0 : index
    %c0_45 = arith.constant 0 : index
    %63 = vector.load %arg16[%62, %c0_44, %c0_45] : memref<8x8x128xf32, #tpu.memory_space<vmem>>, vector<1x8x128xf32>
    %64 = vector.shape_cast %63 : vector<1x8x128xf32> to vector<8x128xf32>
    %cst_46 = arith.constant dense<0.000000e+00> : vector<8x128xf32>
    %65 = tpu.matmul %61, %24, %cst_46 {dimension_numbers = #tpu.dot_dimension_numbers<[1], [0], [0], [1], [0, 0, 1, 1], [], []>} : vector<8x128xf32>, vector<128x128xf32>, vector<8x128xf32> -> vector<8x128xf32>
    %66 = arith.addf %64, %65 : vector<8x128xf32>
    %67 = math.tanh %66 : vector<8x128xf32>
    %68 = arith.index_cast %c3_i32 : i32 to index
    %c0_47 = arith.constant 0 : index
    %c0_48 = arith.constant 0 : index
    %69 = vector.load %arg17[%68, %c0_47, %c0_48] : memref<8x8x128xf32, #tpu.memory_space<vmem>>, vector<1x8x128xf32>
    %70 = vector.shape_cast %69 : vector<1x8x128xf32> to vector<8x128xf32>
    %71 = arith.subf %67, %61 : vector<8x128xf32>
    %72 = arith.mulf %70, %71 : vector<8x128xf32>
    %73 = arith.addf %61, %72 : vector<8x128xf32>
    %c4_i32 = arith.constant 4 : i32
    %74 = arith.index_cast %c4_i32 : i32 to index
    %c0_49 = arith.constant 0 : index
    %c0_50 = arith.constant 0 : index
    %75 = vector.load %arg16[%74, %c0_49, %c0_50] : memref<8x8x128xf32, #tpu.memory_space<vmem>>, vector<1x8x128xf32>
    %76 = vector.shape_cast %75 : vector<1x8x128xf32> to vector<8x128xf32>
    %cst_51 = arith.constant dense<0.000000e+00> : vector<8x128xf32>
    %77 = tpu.matmul %73, %24, %cst_51 {dimension_numbers = #tpu.dot_dimension_numbers<[1], [0], [0], [1], [0, 0, 1, 1], [], []>} : vector<8x128xf32>, vector<128x128xf32>, vector<8x128xf32> -> vector<8x128xf32>
    %78 = arith.addf %76, %77 : vector<8x128xf32>
    %79 = math.tanh %78 : vector<8x128xf32>
    %80 = arith.index_cast %c4_i32 : i32 to index
    %c0_52 = arith.constant 0 : index
    %c0_53 = arith.constant 0 : index
    %81 = vector.load %arg17[%80, %c0_52, %c0_53] : memref<8x8x128xf32, #tpu.memory_space<vmem>>, vector<1x8x128xf32>
    %82 = vector.shape_cast %81 : vector<1x8x128xf32> to vector<8x128xf32>
    %83 = arith.subf %79, %73 : vector<8x128xf32>
    %84 = arith.mulf %82, %83 : vector<8x128xf32>
    %85 = arith.addf %73, %84 : vector<8x128xf32>
    %c5_i32 = arith.constant 5 : i32
    %86 = arith.index_cast %c5_i32 : i32 to index
    %c0_54 = arith.constant 0 : index
    %c0_55 = arith.constant 0 : index
    %87 = vector.load %arg16[%86, %c0_54, %c0_55] : memref<8x8x128xf32, #tpu.memory_space<vmem>>, vector<1x8x128xf32>
    %88 = vector.shape_cast %87 : vector<1x8x128xf32> to vector<8x128xf32>
    %cst_56 = arith.constant dense<0.000000e+00> : vector<8x128xf32>
    %89 = tpu.matmul %85, %24, %cst_56 {dimension_numbers = #tpu.dot_dimension_numbers<[1], [0], [0], [1], [0, 0, 1, 1], [], []>} : vector<8x128xf32>, vector<128x128xf32>, vector<8x128xf32> -> vector<8x128xf32>
    %90 = arith.addf %88, %89 : vector<8x128xf32>
    %91 = math.tanh %90 : vector<8x128xf32>
    %92 = arith.index_cast %c5_i32 : i32 to index
    %c0_57 = arith.constant 0 : index
    %c0_58 = arith.constant 0 : index
    %93 = vector.load %arg17[%92, %c0_57, %c0_58] : memref<8x8x128xf32, #tpu.memory_space<vmem>>, vector<1x8x128xf32>
    %94 = vector.shape_cast %93 : vector<1x8x128xf32> to vector<8x128xf32>
    %95 = arith.subf %91, %85 : vector<8x128xf32>
    %96 = arith.mulf %94, %95 : vector<8x128xf32>
    %97 = arith.addf %85, %96 : vector<8x128xf32>
    %c6_i32 = arith.constant 6 : i32
    %98 = arith.index_cast %c6_i32 : i32 to index
    %c0_59 = arith.constant 0 : index
    %c0_60 = arith.constant 0 : index
    %99 = vector.load %arg16[%98, %c0_59, %c0_60] : memref<8x8x128xf32, #tpu.memory_space<vmem>>, vector<1x8x128xf32>
    %100 = vector.shape_cast %99 : vector<1x8x128xf32> to vector<8x128xf32>
    %cst_61 = arith.constant dense<0.000000e+00> : vector<8x128xf32>
    %101 = tpu.matmul %97, %24, %cst_61 {dimension_numbers = #tpu.dot_dimension_numbers<[1], [0], [0], [1], [0, 0, 1, 1], [], []>} : vector<8x128xf32>, vector<128x128xf32>, vector<8x128xf32> -> vector<8x128xf32>
    %102 = arith.addf %100, %101 : vector<8x128xf32>
    %103 = math.tanh %102 : vector<8x128xf32>
    %104 = arith.index_cast %c6_i32 : i32 to index
    %c0_62 = arith.constant 0 : index
    %c0_63 = arith.constant 0 : index
    %105 = vector.load %arg17[%104, %c0_62, %c0_63] : memref<8x8x128xf32, #tpu.memory_space<vmem>>, vector<1x8x128xf32>
    %106 = vector.shape_cast %105 : vector<1x8x128xf32> to vector<8x128xf32>
    %107 = arith.subf %103, %97 : vector<8x128xf32>
    %108 = arith.mulf %106, %107 : vector<8x128xf32>
    %109 = arith.addf %97, %108 : vector<8x128xf32>
    %c7_i32 = arith.constant 7 : i32
    %110 = arith.index_cast %c7_i32 : i32 to index
    %c0_64 = arith.constant 0 : index
    %c0_65 = arith.constant 0 : index
    %111 = vector.load %arg16[%110, %c0_64, %c0_65] : memref<8x8x128xf32, #tpu.memory_space<vmem>>, vector<1x8x128xf32>
    %112 = vector.shape_cast %111 : vector<1x8x128xf32> to vector<8x128xf32>
    %cst_66 = arith.constant dense<0.000000e+00> : vector<8x128xf32>
    %113 = tpu.matmul %109, %24, %cst_66 {dimension_numbers = #tpu.dot_dimension_numbers<[1], [0], [0], [1], [0, 0, 1, 1], [], []>} : vector<8x128xf32>, vector<128x128xf32>, vector<8x128xf32> -> vector<8x128xf32>
    %114 = arith.addf %112, %113 : vector<8x128xf32>
    %115 = math.tanh %114 : vector<8x128xf32>
    %116 = arith.index_cast %c7_i32 : i32 to index
    %c0_67 = arith.constant 0 : index
    %c0_68 = arith.constant 0 : index
    %117 = vector.load %arg17[%116, %c0_67, %c0_68] : memref<8x8x128xf32, #tpu.memory_space<vmem>>, vector<1x8x128xf32>
    %118 = vector.shape_cast %117 : vector<1x8x128xf32> to vector<8x128xf32>
    %119 = arith.subf %115, %109 : vector<8x128xf32>
    %120 = arith.mulf %118, %119 : vector<8x128xf32>
    %121 = arith.addf %109, %120 : vector<8x128xf32>
    %c8_i32 = arith.constant 8 : i32
    %c0_69 = arith.constant 0 : index
    %c0_70 = arith.constant 0 : index
    %122 = vector.load %arg9[%c0_69, %c0_70] : memref<12x128xf32, #tpu.memory_space<vmem>>, vector<12x128xf32>
    %cst_71 = arith.constant dense<0.000000e+00> : vector<8x128xf32>
    %123 = tpu.matmul %23, %122, %cst_71 {dimension_numbers = #tpu.dot_dimension_numbers<[1], [0], [0], [1], [0, 0, 1, 1], [], []>} : vector<8x12xf32>, vector<12x128xf32>, vector<8x128xf32> -> vector<8x128xf32>
    %c0_72 = arith.constant 0 : index
    %c0_73 = arith.constant 0 : index
    %124 = vector.load %arg10[%c0_72, %c0_73] : memref<1x128xf32, #tpu.memory_space<vmem>>, vector<1x128xf32>
    %125 = vector.broadcast %124 : vector<1x128xf32> to vector<8x128xf32>
    %126 = arith.addf %123, %125 : vector<8x128xf32>
    %cst_74 = arith.constant 0.000000e+00 : f32
    %127 = vector.broadcast %cst_74 : f32 to vector<8x128xf32>
    %128 = arith.maximumf %126, %127 : vector<8x128xf32>
    %c0_75 = arith.constant 0 : index
    %c0_76 = arith.constant 0 : index
    %129 = vector.load %arg11[%c0_75, %c0_76] : memref<128x128xf32, #tpu.memory_space<vmem>>, vector<128x128xf32>
    %cst_77 = arith.constant dense<0.000000e+00> : vector<8x128xf32>
    %130 = tpu.matmul %128, %129, %cst_77 {dimension_numbers = #tpu.dot_dimension_numbers<[1], [0], [0], [1], [0, 0, 1, 1], [], []>} : vector<8x128xf32>, vector<128x128xf32>, vector<8x128xf32> -> vector<8x128xf32>
    %c0_78 = arith.constant 0 : index
    %c0_79 = arith.constant 0 : index
    %131 = vector.load %arg12[%c0_78, %c0_79] : memref<128x128xf32, #tpu.memory_space<vmem>>, vector<128x128xf32>
    %cst_80 = arith.constant dense<0.000000e+00> : vector<8x128xf32>
    %132 = tpu.matmul %121, %131, %cst_80 {dimension_numbers = #tpu.dot_dimension_numbers<[1], [0], [0], [1], [0, 0, 1, 1], [], []>} : vector<8x128xf32>, vector<128x128xf32>, vector<8x128xf32> -> vector<8x128xf32>
    %133 = arith.addf %130, %132 : vector<8x128xf32>
    %c0_81 = arith.constant 0 : index
    %c0_82 = arith.constant 0 : index
    %134 = vector.load %arg13[%c0_81, %c0_82] : memref<1x128xf32, #tpu.memory_space<vmem>>, vector<1x128xf32>
    %135 = vector.broadcast %134 : vector<1x128xf32> to vector<8x128xf32>
    %136 = arith.addf %133, %135 : vector<8x128xf32>
    %c0_83 = arith.constant 0 : index
    %c0_84 = arith.constant 0 : index
    %137 = vector.load %arg14[%c0_83, %c0_84] : memref<8x128xf32, #tpu.memory_space<vmem>>, vector<8x128xf32>
    tpu.vector_store %arg14[%c0_83, %c0_84], %136 {strides = array<i32>} : memref<8x128xf32, #tpu.memory_space<vmem>>, vector<8x128xf32>,
    %c0_85 = arith.constant 0 : index
    %c0_86 = arith.constant 0 : index
    %138 = vector.load %arg15[%c0_85, %c0_86] : memref<8x128xf32, #tpu.memory_space<vmem>>, vector<8x128xf32>
    tpu.vector_store %arg15[%c0_85, %c0_86], %121 {strides = array<i32>} : memref<8x128xf32, #tpu.memory_space<vmem>>, vector<8x128xf32>,
    return
  }
}

</mosaic_0001>

<llo_original>
// kernel: _forward_impl.1
$region0: #{_forward_impl.1}
  #allocation0 [shape = 'u32[]', space=smem, size = 0x4, offset = 0x4, fixed_abs, tag = 'smem constant byte address 0x4 - core index']
  #allocation1 [shape = 'u32[144,128]{1,0:T(1,128)}', space=vmem, size = 0x12000, scoped, tag = 'internal scratch']
  #allocation2 [shape = 'f32[8,8,128]{2,1,0:T(8,128)}', space=vmem, size = 0x8000, scoped, tag = 'scratch operand']
  #allocation3 [shape = 'f32[8,8,128]{2,1,0:T(8,128)}', space=vmem, size = 0x8000, scoped, tag = 'scratch operand']
  %s0 = inlined_call_operand.vmem [shape: f32[8,8,1], index: 0, kind: input, shape index: {}]
  %s1 = inlined_call_operand.vmem [shape: f32[8,8,1], index: 1, kind: input, shape index: {}]
  %s2 = inlined_call_operand.vmem [shape: f32[8,8,12], index: 2, kind: input, shape index: {}]
  %s3 = inlined_call_operand.vmem [shape: f32[8,128], index: 3, kind: input, shape index: {}]
  %s4 = inlined_call_operand.vmem [shape: f32[12,128], index: 4, kind: input, shape index: {}]
  %s5 = inlined_call_operand.vmem [shape: f32[1,128], index: 5, kind: input, shape index: {}]
  %s6 = inlined_call_operand.hbm [shape: f32[128,128], index: 6, kind: input, shape index: {}]
  %s7 = inlined_call_operand.vmem [shape: f32[1,128], index: 7, kind: input, shape index: {}]
  %s8 = inlined_call_operand.hbm [shape: f32[128,128], index: 8, kind: input, shape index: {}]
  %s9 = inlined_call_operand.vmem [shape: f32[12,128], index: 9, kind: input, shape index: {}]
  %s10 = inlined_call_operand.vmem [shape: f32[1,128], index: 10, kind: input, shape index: {}]
  %s11 = inlined_call_operand.vmem [shape: f32[128,128], index: 11, kind: input, shape index: {}]
  %s12 = inlined_call_operand.vmem [shape: f32[128,128], index: 12, kind: input, shape index: {}]
  %s13 = inlined_call_operand.vmem [shape: f32[1,128], index: 13, kind: input, shape index: {}]
  %s14 = inlined_call_operand.hbm [shape: f32[8,128], index: 14, kind: output, shape index: {0}]
  %s15 = inlined_call_operand.hbm [shape: f32[8,128], index: 15, kind: output, shape index: {1}]
  %16 = xla_tuple %s14, %s15
  %s17 = sld [smem:[#allocation0]]
  $region82: #{_forward_impl.1} parent=0
    _
  %s19 = ssub.s32 1, %s17
  %s20 = scalar_select 0, %s19, %s17
  $region1: #{_forward_impl.1} parent=0
    #allocation4 [shape = 'u8[65536]{0}', space=vmem, size = 0x10000, scoped, tag = 'input window, operand 6, single buffered']
    #allocation5 [shape = 's32[1]{0}', space=sflag, size = 0x4, scoped, tag = 'scoped memory for _forward_impl.1']
    #allocation6 [shape = 's32[1]{0}', space=sflag, size = 0x4, scoped, tag = 'scoped memory for _forward_impl.1']
    #allocation7 [shape = 'u8[65536]{0}', space=vmem, size = 0x10000, scoped, tag = 'input window, operand 8, single buffered']
    #allocation8 [shape = 's32[1]{0}', space=sflag, size = 0x4, scoped, tag = 'scoped memory for _forward_impl.1']
    #allocation9 [shape = 'u8[4096]{0}', space=vmem, size = 0x1000, scoped, tag = 'output window, operand 0, single buffered']
    #allocation10 [shape = 'u8[4096]{0}', space=vmem, size = 0x1000, scoped, tag = 'output window, operand 1, single buffered']
    #allocation11 [shape = 's32[1]{0}', space=sflag, size = 0x4, scoped, tag = 'scoped memory for _forward_impl.1']
    %21 = vsyncpa [#allocation5], 0
    %22 = vsyncpa [#allocation8], 0
    %23 = vsyncpa [#allocation6], 0
    %24 = vsyncpa [#allocation11], 0
    // Predicated region
    $region2: #{_forward_impl.1} parent=1 // pred_check
      _
    $region3: #{_forward_impl.1} parent=1 // pred_check_branch
      %26 = sbr.rel (0) target = $region5
    $region4: #{_forward_impl.1} parent=1 // pred_region
      _
    $region5: #{_forward_impl.1} parent=1 // pred_fallthru
      _
    // Predicated region
    $region6: #{_forward_impl.1} parent=1 // pred_check
      _
    $region7: #{_forward_impl.1} parent=1 // pred_check_branch
      %28 = sbr.rel (0) target = $region9
    $region8: #{_forward_impl.1} parent=1 // pred_region
      _
    $region9: #{_forward_impl.1} parent=1 // pred_fallthru
      _
    // Predicated region
    $region10: #{_forward_impl.1} parent=1 // pred_check
      _
    $region11: #{_forward_impl.1} parent=1 // pred_check_branch
      %30 = sbr.rel (0) target = $region13
    $region12: #{_forward_impl.1} parent=1 // pred_region
      _
    $region13: #{_forward_impl.1} parent=1 // pred_fallthru
      _
    // Predicated region
    $region14: #{_forward_impl.1} parent=1 // pred_check
      _
    $region15: #{_forward_impl.1} parent=1 // pred_check_branch
      %32 = sbr.rel (0) target = $region17
    $region16: #{_forward_impl.1} parent=1 // pred_region
      _
    $region17: #{_forward_impl.1} parent=1 // pred_fallthru
      _
    // Predicated region
    $region18: #{_forward_impl.1} parent=1 // pred_check
      _
    $region19: #{_forward_impl.1} parent=1 // pred_check_branch
      %34 = sbr.rel (0) target = $region21
    $region20: #{_forward_impl.1} parent=1 // pred_region
      _
    $region21: #{_forward_impl.1} parent=1 // pred_fallthru
      _
    // Predicated region
    $region22: #{_forward_impl.1} parent=1 // pred_check
      _
    $region23: #{_forward_impl.1} parent=1 // pred_check_branch
      %36 = sbr.rel (0) target = $region25
    $region24: #{_forward_impl.1} parent=1 // pred_region
      _
    $region25: #{_forward_impl.1} parent=1 // pred_fallthru
      _
    // Predicated region
    $region26: #{_forward_impl.1} parent=1 // pred_check
      _
    $region27: #{_forward_impl.1} parent=1 // pred_check_branch
      %38 = sbr.rel (0) target = $region29
    $region28: #{_forward_impl.1} parent=1 // pred_region
      %s40 = ssub.s32 2048, 2048
      %41 = vsyncadd [#allocation5], %s40
      %s42 = sshll.u32 [#allocation4], 4
      %s43 = int_to_ptr.vmem [resolvable:$true] %s42
      %48 = dma.hbm_to_vmem [thread:$0]  %s6, 2048, %s43, [#allocation5], 128, 128, 8
    $region29: #{_forward_impl.1} parent=1 // pred_fallthru
      _
    // Predicated region
    $region30: #{_forward_impl.1} parent=1 // pred_check
      _
    $region31: #{_forward_impl.1} parent=1 // pred_check_branch
      %50 = sbr.rel (0) target = $region33
    $region32: #{_forward_impl.1} parent=1 // pred_region
      _
    $region33: #{_forward_impl.1} parent=1 // pred_fallthru
      _
    // Predicated region
    $region34: #{_forward_impl.1} parent=1 // pred_check
      _
    $region35: #{_forward_impl.1} parent=1 // pred_check_branch
      %52 = sbr.rel (0) target = $region37
    $region36: #{_forward_impl.1} parent=1 // pred_region
      %s54 = ssub.s32 2048, 2048
      %55 = vsyncadd [#allocation8], %s54
      %s56 = sshll.u32 [#allocation7], 4
      %s57 = int_to_ptr.vmem [resolvable:$true] %s56
      %62 = dma.hbm_to_vmem [thread:$0]  %s8, 2048, %s57, [#allocation8], 128, 128, 8
    $region37: #{_forward_impl.1} parent=1 // pred_fallthru
      _
    // Predicated region
    $region38: #{_forward_impl.1} parent=1 // pred_check
      _
    $region39: #{_forward_impl.1} parent=1 // pred_check_branch
      %64 = sbr.rel (0) target = $region41
    $region40: #{_forward_impl.1} parent=1 // pred_region
      _
    $region41: #{_forward_impl.1} parent=1 // pred_fallthru
      _
    // Predicated region
    $region42: #{_forward_impl.1} parent=1 // pred_check
      _
    $region43: #{_forward_impl.1} parent=1 // pred_check_branch
      %66 = sbr.rel (0) target = $region45
    $region44: #{_forward_impl.1} parent=1 // pred_region
      _
    $region45: #{_forward_impl.1} parent=1 // pred_fallthru
      _
    // Predicated region
    $region46: #{_forward_impl.1} parent=1 // pred_check
      _
    $region47: #{_forward_impl.1} parent=1 // pred_check_branch
      %68 = sbr.rel (0) target = $region49
    $region48: #{_forward_impl.1} parent=1 // pred_region
      _
    $region49: #{_forward_impl.1} parent=1 // pred_fallthru
      _
    // Predicated region
    $region50: #{_forward_impl.1} parent=1 // pred_check
      _
    $region51: #{_forward_impl.1} parent=1 // pred_check_branch
      %70 = sbr.rel (0) target = $region53
    $region52: #{_forward_impl.1} parent=1 // pred_region
      _
    $region53: #{_forward_impl.1} parent=1 // pred_fallthru
      _
    // Predicated region
    $region54: #{_forward_impl.1} parent=1 // pred_check
      _
    $region55: #{_forward_impl.1} parent=1 // pred_check_branch
      %72 = sbr.rel (0) target = $region57
    $region56: #{_forward_impl.1} parent=1 // pred_region
      _
    $region57: #{_forward_impl.1} parent=1 // pred_fallthru
      _
    // Predicated region
    $region58: #{_forward_impl.1} parent=1 // pred_check
      _
    $region59: #{_forward_impl.1} parent=1 // pred_check_branch
      %74 = sbr.rel (0) target = $region61
    $region60: #{_forward_impl.1} parent=1 // pred_region
      %75 = dma.done [#allocation5], 2048
    $region61: #{_forward_impl.1} parent=1 // pred_fallthru
      _
    // Predicated region
    $region62: #{_forward_impl.1} parent=1 // pred_check
      _
    $region63: #{_forward_impl.1} parent=1 // pred_check_branch
      %77 = sbr.rel (0) target = $region65
    $region64: #{_forward_impl.1} parent=1 // pred_region
      %78 = dma.done [#allocation8], 2048
    $region65: #{_forward_impl.1} parent=1 // pred_fallthru
      _
    %v79 = vld [vmem:[%s2] sm:$0xff]
    %v80 = vld [vmem:[%s2 + $0x8] sm:$0xff]
    %v81 = vld [vmem:[%s2 + $0x10] sm:$0xff]
    %v82 = vld [vmem:[%s2 + $0x18] sm:$0xff]
    %v83 = vld [vmem:[%s2 + $0x20] sm:$0xff]
    %v84 = vld [vmem:[%s2 + $0x28] sm:$0xff]
    %v85 = vld [vmem:[%s2 + $0x30] sm:$0xff]
    %v86 = vld [vmem:[%s2 + $0x38] sm:$0xff]
    %v87 = vld [vmem:[%s4] sm:$0xff]
    %v88 = vld [vmem:[%s4 + $0x8] sm:$0xf]
    %v89 = vld [vmem:[%s5] sm:$0x1]
    %v91 = vlaneseq
    %v92 = vshrl.u32 %v91, 7
    %v93 = vsub.s32 0, %v92
    %v94 = vrot.slane %v89, %v93
    %vm96 = vcmask 97280
    %v98 = vsel %vm96, %v79, 0
    %v101 = vsel %vm96, %v80, 0
    %v104 = vsel %vm96, %v81, 0
    %v107 = vsel %vm96, %v82, 0
    %v110 = vsel %vm96, %v83, 0
    %v113 = vsel %vm96, %v84, 0
    %v116 = vsel %vm96, %v85, 0
    %v119 = vsel %vm96, %v86, 0
    %vm121 = vcmask 1043456
    %v123 = vsel %vm121, %v88, 0
    %125 = vmatprep.subr.mxu0 0.0
    %126 = vmatpush1.msra.mxu0 %v87
    %127 = vmatprep.subr.mxu0 0.0
    %128 = vmatpush1.msra.mxu0 %v123
    %129 = vmatprep.subr.mxu0 0.0
    %130 = vmatpush1.msra.mxu0 0.0
    %131 = vmatprep.subr.mxu0 0.0
    %132 = vmatpush1.msra.mxu0 0.0
    %133 = vmatprep.subr.mxu0 0.0
    %134 = vmatpush1.msra.mxu0 0.0
    %135 = vmatprep.subr.mxu0 0.0
    %136 = vmatpush1.msra.mxu0 0.0
    %137 = vmatprep.subr.mxu0 0.0
    %138 = vmatpush1.msra.mxu0 0.0
    %139 = vmatprep.subr.mxu0 0.0
    %140 = vmatpush1.msra.mxu0 0.0
    %141 = vmatprep.subr.mxu0 0.0
    %142 = vmatpush1.msra.mxu0 0.0
    %143 = vmatprep.subr.mxu0 0.0
    %144 = vmatpush1.msra.mxu0 0.0
    %145 = vmatprep.subr.mxu0 0.0
    %146 = vmatpush1.msra.mxu0 0.0
    %147 = vmatprep.subr.mxu0 0.0
    %148 = vmatpush1.msra.mxu0 0.0
    %149 = vmatprep.subr.mxu0 0.0
    %150 = vmatpush1.msra.mxu0 0.0
    %151 = vmatprep.subr.mxu0 0.0
    %152 = vmatpush1.msra.mxu0 0.0
    %153 = vmatprep.subr.mxu0 0.0
    %154 = vmatpush1.msra.mxu0 0.0
    %155 = vmatprep.subr.mxu0 0.0
    %156 = vmatpush1.msra.mxu0 0.0
    %157 = vmatprep.subr.mxu0 0.0
    %158 = vmatpush1.msra.mxu0 0.0
    %159 = vmatprep.subr.mxu0 0.0
    %160 = vmatpush1.msra.mxu0 0.0
    %161 = vmatprep.subr.mxu0 0.0
    %162 = vmatpush1.msra.mxu0 0.0
    %163 = vmatprep.subr.mxu0 0.0
    %164 = vmatpush1.msra.mxu0 0.0
    %165 = vmatprep.subr.mxu0 0.0
    %166 = vmatpush1.msra.mxu0 0.0
    %167 = vmatprep.subr.mxu0 0.0
    %168 = vmatpush1.msra.mxu0 0.0
    %169 = vmatprep.subr.mxu0 0.0
    %170 = vmatpush1.msra.mxu0 0.0
    %171 = vmatprep.subr.mxu0 0.0
    %172 = vmatpush1.msra.mxu0 0.0
    %173 = vmatprep.subr.mxu0 0.0
    %174 = vmatpush1.msra.mxu0 0.0
    %175 = vmatprep.subr.mxu0 0.0
    %176 = vmatpush1.msra.mxu0 0.0
    %177 = vmatprep.subr.mxu0 0.0
    %178 = vmatpush1.msra.mxu0 0.0
    %179 = vmatprep.subr.mxu0 0.0
    %180 = vmatpush1.msra.mxu0 0.0
    %181 = vmatprep.subr.mxu0 0.0
    %182 = vmatpush1.msra.mxu0 0.0
    %183 = vmatprep.subr.mxu0 0.0
    %184 = vmatpush1.msra.mxu0 0.0
    %185 = vmatprep.subr.mxu0 0.0
    %186 = vmatpush1.msra.mxu0 0.0
    %187 = vmatprep.subr.mxu0 0.0
    %188 = vmatpush1.msra.mxu0 0.0
    %189 = vmatprep.mubr.f32.mxu0 0.0
    %190 = vmatmul.mubr.f32.gmra.mrb[0].mxu0 %v98
    %v191 = vpop.f32.mrb[0].mxu0
    %v192 = vadd.f32 %v94, %v191
    %v193 = vpop.f32.mrb[0].mxu0
    %194 = vmatprep.mubr.f32.mxu0 0.0
    %195 = vmatmul.mubr.f32.gmra.mrb[0].mxu0 %v101
    %v196 = vpop.f32.mrb[0].mxu0
    %v197 = vadd.f32 %v94, %v196
    %v198 = vpop.f32.mrb[0].mxu0
    %199 = vmatprep.mubr.f32.mxu0 0.0
    %200 = vmatmul.mubr.f32.gmra.mrb[0].mxu0 %v104
    %v201 = vpop.f32.mrb[0].mxu0
    %v202 = vadd.f32 %v94, %v201
    %v203 = vpop.f32.mrb[0].mxu0
    %204 = vmatprep.mubr.f32.mxu0 0.0
    %205 = vmatmul.mubr.f32.gmra.mrb[0].mxu0 %v107
    %v206 = vpop.f32.mrb[0].mxu0
    %v207 = vadd.f32 %v94, %v206
    %v208 = vpop.f32.mrb[0].mxu0
    %209 = vmatprep.mubr.f32.mxu0 0.0
    %210 = vmatmul.mubr.f32.gmra.mrb[0].mxu0 %v110
    %v211 = vpop.f32.mrb[0].mxu0
    %v212 = vadd.f32 %v94, %v211
    %v213 = vpop.f32.mrb[0].mxu0
    %214 = vmatprep.mubr.f32.mxu0 0.0
    %215 = vmatmul.mubr.f32.gmra.mrb[0].mxu0 %v113
    %v216 = vpop.f32.mrb[0].mxu0
    %v217 = vadd.f32 %v94, %v216
    %v218 = vpop.f32.mrb[0].mxu0
    %219 = vmatprep.mubr.f32.mxu0 0.0
    %220 = vmatmul.mubr.f32.gmra.mrb[0].mxu0 %v116
    %v221 = vpop.f32.mrb[0].mxu0
    %v222 = vadd.f32 %v94, %v221
    %v223 = vpop.f32.mrb[0].mxu0
    %224 = vmatprep.mubr.f32.mxu0 0.0
    %225 = vmatmul.mubr.f32.gmra.mrb[0].mxu0 %v119
    %v226 = vpop.f32.mrb[0].mxu0
    %v227 = vadd.f32 %v94, %v226
    %v228 = vpop.f32.mrb[0].mxu0
    %229 = vdwg.mxu0
    %v230 = vmax.f32 %v192, 0.0
    %v231 = vmax.f32 %v197, 0.0
    %v232 = vmax.f32 %v202, 0.0
    %v233 = vmax.f32 %v207, 0.0
    %v234 = vmax.f32 %v212, 0.0
    %v235 = vmax.f32 %v217, 0.0
    %v236 = vmax.f32 %v222, 0.0
    %v237 = vmax.f32 %v227, 0.0
    %v238 = vld [vmem:[#allocation4] sm:$0xff]
    %v239 = vld [vmem:[#allocation4 + $0x8] sm:$0xff]
    %v240 = vld [vmem:[#allocation4 + $0x10] sm:$0xff]
    %v241 = vld [vmem:[#allocation4 + $0x18] sm:$0xff]
    %v242 = vld [vmem:[#allocation4 + $0x20] sm:$0xff]
    %v243 = vld [vmem:[#allocation4 + $0x28] sm:$0xff]
    %v244 = vld [vmem:[#allocation4 + $0x30] sm:$0xff]
    %v245 = vld [vmem:[#allocation4 + $0x38] sm:$0xff]
    %v246 = vld [vmem:[#allocation4 + $0x40] sm:$0xff]
    %v247 = vld [vmem:[#allocation4 + $0x48] sm:$0xff]
    %v248 = vld [vmem:[#allocation4 + $0x50] sm:$0xff]
    %v249 = vld [vmem:[#allocation4 + $0x58] sm:$0xff]
    %v250 = vld [vmem:[#allocation4 + $0x60] sm:$0xff]
    %v251 = vld [vmem:[#allocation4 + $0x68] sm:$0xff]
    %v252 = vld [vmem:[#allocation4 + $0x70] sm:$0xff]
    %v253 = vld [vmem:[#allocation4 + $0x78] sm:$0xff]
    %v254 = vld [vmem:[%s7] sm:$0x1]
    %v256 = vlaneseq
    %v257 = vshrl.u32 %v256, 7
    %v258 = vsub.s32 0, %v257
    %v259 = vrot.slane %v254, %v258
    %261 = vmatprep.subr.mxu0 0.0
    %262 = vmatpush1.msra.mxu0 %v238
    %263 = vmatprep.subr.mxu0 0.0
    %264 = vmatpush1.msra.mxu0 %v239
    %265 = vmatprep.subr.mxu0 0.0
    %266 = vmatpush1.msra.mxu0 %v240
    %267 = vmatprep.subr.mxu0 0.0
    %268 = vmatpush1.msra.mxu0 %v241
    %269 = vmatprep.subr.mxu0 0.0
    %270 = vmatpush1.msra.mxu0 %v242
    %271 = vmatprep.subr.mxu0 0.0
    %272 = vmatpush1.msra.mxu0 %v243
    %273 = vmatprep.subr.mxu0 0.0
    %274 = vmatpush1.msra.mxu0 %v244
    %275 = vmatprep.subr.mxu0 0.0
    %276 = vmatpush1.msra.mxu0 %v245
    %277 = vmatprep.subr.mxu0 0.0
    %278 = vmatpush1.msra.mxu0 %v246
    %279 = vmatprep.subr.mxu0 0.0
    %280 = vmatpush1.msra.mxu0 %v247
    %281 = vmatprep.subr.mxu0 0.0
    %282 = vmatpush1.msra.mxu0 %v248
    %283 = vmatprep.subr.mxu0 0.0
    %284 = vmatpush1.msra.mxu0 %v249
    %285 = vmatprep.subr.mxu0 0.0
    %286 = vmatpush1.msra.mxu0 %v250
    %287 = vmatprep.subr.mxu0 0.0
    %288 = vmatpush1.msra.mxu0 %v251
    %289 = vmatprep.subr.mxu0 0.0
    %290 = vmatpush1.msra.mxu0 %v252
    %291 = vmatprep.subr.mxu0 0.0
    %292 = vmatpush1.msra.mxu0 %v253
    %293 = vmatprep.subr.mxu0 0.0
    %294 = vmatpush1.msra.mxu0 0.0
    %295 = vmatprep.subr.mxu0 0.0
    %296 = vmatpush1.msra.mxu0 0.0
    %297 = vmatprep.subr.mxu0 0.0
    %298 = vmatpush1.msra.mxu0 0.0
    %299 = vmatprep.subr.mxu0 0.0
    %300 = vmatpush1.msra.mxu0 0.0
    %301 = vmatprep.subr.mxu0 0.0
    %302 = vmatpush1.msra.mxu0 0.0
    %303 = vmatprep.subr.mxu0 0.0
    %304 = vmatpush1.msra.mxu0 0.0
    %305 = vmatprep.subr.mxu0 0.0
    %306 = vmatpush1.msra.mxu0 0.0
    %307 = vmatprep.subr.mxu0 0.0
    %308 = vmatpush1.msra.mxu0 0.0
    %309 = vmatprep.subr.mxu0 0.0
    %310 = vmatpush1.msra.mxu0 0.0
    %311 = vmatprep.subr.mxu0 0.0
    %312 = vmatpush1.msra.mxu0 0.0
    %313 = vmatprep.subr.mxu0 0.0
    %314 = vmatpush1.msra.mxu0 0.0
    %315 = vmatprep.subr.mxu0 0.0
    %316 = vmatpush1.msra.mxu0 0.0
    %317 = vmatprep.subr.mxu0 0.0
    %318 = vmatpush1.msra.mxu0 0.0
    %319 = vmatprep.subr.mxu0 0.0
    %320 = vmatpush1.msra.mxu0 0.0
    %321 = vmatprep.subr.mxu0 0.0
    %322 = vmatpush1.msra.mxu0 0.0
    %323 = vmatprep.subr.mxu0 0.0
    %324 = vmatpush1.msra.mxu0 0.0
    %325 = vmatprep.mubr.f32.mxu0 0.0
    %326 = vmatmul.mubr.f32.gmra.mrb[0].mxu0 %v230
    %v327 = vpop.f32.mrb[0].mxu0
    %v328 = vadd.f32 %v259, %v327
    %v329 = vpop.f32.mrb[0].mxu0
    %330 = vmatprep.mubr.f32.mxu0 0.0
    %331 = vmatmul.mubr.f32.gmra.mrb[0].mxu0 %v231
    %v332 = vpop.f32.mrb[0].mxu0
    %v333 = vadd.f32 %v259, %v332
    %v334 = vpop.f32.mrb[0].mxu0
    %335 = vmatprep.mubr.f32.mxu0 0.0
    %336 = vmatmul.mubr.f32.gmra.mrb[0].mxu0 %v232
    %v337 = vpop.f32.mrb[0].mxu0
    %v338 = vadd.f32 %v259, %v337
    %v339 = vpop.f32.mrb[0].mxu0
    %340 = vmatprep.mubr.f32.mxu0 0.0
    %341 = vmatmul.mubr.f32.gmra.mrb[0].mxu0 %v233
    %v342 = vpop.f32.mrb[0].mxu0
    %v343 = vadd.f32 %v259, %v342
    %v344 = vpop.f32.mrb[0].mxu0
    %345 = vmatprep.mubr.f32.mxu0 0.0
    %346 = vmatmul.mubr.f32.gmra.mrb[0].mxu0 %v234
    %v347 = vpop.f32.mrb[0].mxu0
    %v348 = vadd.f32 %v259, %v347
    %v349 = vpop.f32.mrb[0].mxu0
    %350 = vmatprep.mubr.f32.mxu0 0.0
    %351 = vmatmul.mubr.f32.gmra.mrb[0].mxu0 %v235
    %v352 = vpop.f32.mrb[0].mxu0
    %v353 = vadd.f32 %v259, %v352
    %v354 = vpop.f32.mrb[0].mxu0
    %355 = vmatprep.mubr.f32.mxu0 0.0
    %356 = vmatmul.mubr.f32.gmra.mrb[0].mxu0 %v236
    %v357 = vpop.f32.mrb[0].mxu0
    %v358 = vadd.f32 %v259, %v357
    %v359 = vpop.f32.mrb[0].mxu0
    %360 = vmatprep.mubr.f32.mxu0 0.0
    %361 = vmatmul.mubr.f32.gmra.mrb[0].mxu0 %v237
    %v362 = vpop.f32.mrb[0].mxu0
    %v363 = vadd.f32 %v259, %v362
    %v364 = vpop.f32.mrb[0].mxu0
    %365 = vdwg.mxu0
    %366 = vst [vmem:[#allocation2] sm:$0xff] %v328
    %367 = vst [vmem:[#allocation2 + $0x8] sm:$0xff] %v333
    %368 = vst [vmem:[#allocation2 + $0x10] sm:$0xff] %v338
    %369 = vst [vmem:[#allocation2 + $0x18] sm:$0xff] %v343
    %370 = vst [vmem:[#allocation2 + $0x20] sm:$0xff] %v348
    %371 = vst [vmem:[#allocation2 + $0x28] sm:$0xff] %v353
    %372 = vst [vmem:[#allocation2 + $0x30] sm:$0xff] %v358
    %373 = vst [vmem:[#allocation2 + $0x38] sm:$0xff] %v363
    %v374 = vld [vmem:[%s0] sm:$0xff]
    %v375 = vld [vmem:[%s0 + $0x8] sm:$0xff]
    %v376 = vld [vmem:[%s0 + $0x10] sm:$0xff]
    %v377 = vld [vmem:[%s0 + $0x18] sm:$0xff]
    %v378 = vld [vmem:[%s0 + $0x20] sm:$0xff]
    %v379 = vld [vmem:[%s0 + $0x28] sm:$0xff]
    %v380 = vld [vmem:[%s0 + $0x30] sm:$0xff]
    %v381 = vld [vmem:[%s0 + $0x38] sm:$0xff]
    %383 = vset.pattern.permute.xlu0 0
    %384 = vperm.xlu0 %383, %v374
    %v385 = vpop.permute.xlu0 %384
    %388 = vset.pattern.permute.xlu0 0
    %389 = vperm.xlu0 %388, %v375
    %v390 = vpop.permute.xlu0 %389
    %393 = vset.pattern.permute.xlu0 0
    %394 = vperm.xlu0 %393, %v376
    %v395 = vpop.permute.xlu0 %394
    %398 = vset.pattern.permute.xlu0 0
    %399 = vperm.xlu0 %398, %v377
    %v400 = vpop.permute.xlu0 %399
    %403 = vset.pattern.permute.xlu0 0
    %404 = vperm.xlu0 %403, %v378
    %v405 = vpop.permute.xlu0 %404
    %408 = vset.pattern.permute.xlu0 0
    %409 = vperm.xlu0 %408, %v379
    %v410 = vpop.permute.xlu0 %409
    %413 = vset.pattern.permute.xlu0 0
    %414 = vperm.xlu0 %413, %v380
    %v415 = vpop.permute.xlu0 %414
    %418 = vset.pattern.permute.xlu0 0
    %419 = vperm.xlu0 %418, %v381
    %v420 = vpop.permute.xlu0 %419
    %422 = vst [vmem:[#allocation3] sm:$0xff] %v385
    %423 = vst [vmem:[#allocation3 + $0x8] sm:$0xff] %v390
    %424 = vst [vmem:[#allocation3 + $0x10] sm:$0xff] %v395
    %425 = vst [vmem:[#allocation3 + $0x18] sm:$0xff] %v400
    %426 = vst [vmem:[#allocation3 + $0x20] sm:$0xff] %v405
    %427 = vst [vmem:[#allocation3 + $0x28] sm:$0xff] %v410
    %428 = vst [vmem:[#allocation3 + $0x30] sm:$0xff] %v415
    %429 = vst [vmem:[#allocation3 + $0x38] sm:$0xff] %v420
    %v430 = vld [vmem:[%s1] sm:$0xff]
    %v431 = vld [vmem:[%s1 + $0x8] sm:$0xff]
    %v432 = vld [vmem:[%s1 + $0x10] sm:$0xff]
    %v433 = vld [vmem:[%s1 + $0x18] sm:$0xff]
    %v434 = vld [vmem:[%s1 + $0x20] sm:$0xff]
    %v435 = vld [vmem:[%s1 + $0x28] sm:$0xff]
    %v436 = vld [vmem:[%s1 + $0x30] sm:$0xff]
    %v437 = vld [vmem:[%s1 + $0x38] sm:$0xff]
    %439 = vset.pattern.permute.xlu0 0
    %440 = vperm.xlu0 %439, %v430
    %v441 = vpop.permute.xlu0 %440
    %444 = vset.pattern.permute.xlu0 0
    %445 = vperm.xlu0 %444, %v431
    %v446 = vpop.permute.xlu0 %445
    %449 = vset.pattern.permute.xlu0 0
    %450 = vperm.xlu0 %449, %v432
    %v451 = vpop.permute.xlu0 %450
    %454 = vset.pattern.permute.xlu0 0
    %455 = vperm.xlu0 %454, %v433
    %v456 = vpop.permute.xlu0 %455
    %459 = vset.pattern.permute.xlu0 0
    %460 = vperm.xlu0 %459, %v434
    %v461 = vpop.permute.xlu0 %460
    %464 = vset.pattern.permute.xlu0 0
    %465 = vperm.xlu0 %464, %v435
    %v466 = vpop.permute.xlu0 %465
    %469 = vset.pattern.permute.xlu0 0
    %470 = vperm.xlu0 %469, %v436
    %v471 = vpop.permute.xlu0 %470
    %474 = vset.pattern.permute.xlu0 0
    %475 = vperm.xlu0 %474, %v437
    %v476 = vpop.permute.xlu0 %475
    %v478 = vmul.f32 %v441, %v79
    %v479 = vmul.f32 %v446, %v80
    %v480 = vmul.f32 %v451, %v81
    %v481 = vmul.f32 %v456, %v82
    %v482 = vmul.f32 %v461, %v83
    %v483 = vmul.f32 %v466, %v84
    %v484 = vmul.f32 %v471, %v85
    %v485 = vmul.f32 %v476, %v86
    %v486 = vsel %vm96, %v478, 0.0
    %v487 = vsel %vm96, %v479, 0.0
    %v488 = vadd.f32 %v486, %v487
    %v489 = vsel %vm96, %v480, 0.0
    %v490 = vadd.f32 %v488, %v489
    %v491 = vsel %vm96, %v481, 0.0
    %v492 = vadd.f32 %v490, %v491
    %v493 = vsel %vm96, %v482, 0.0
    %v494 = vadd.f32 %v492, %v493
    %v495 = vsel %vm96, %v483, 0.0
    %v496 = vadd.f32 %v494, %v495
    %v497 = vsel %vm96, %v484, 0.0
    %v498 = vadd.f32 %v496, %v497
    %v499 = vsel %vm96, %v485, 0.0
    %v500 = vadd.f32 %v498, %v499
    %v501 = vld [vmem:[#allocation7] sm:$0xff]
    %v502 = vld [vmem:[#allocation7 + $0x8] sm:$0xff]
    %v503 = vld [vmem:[#allocation7 + $0x10] sm:$0xff]
    %v504 = vld [vmem:[#allocation7 + $0x18] sm:$0xff]
    %v505 = vld [vmem:[#allocation7 + $0x20] sm:$0xff]
    %v506 = vld [vmem:[#allocation7 + $0x28] sm:$0xff]
    %v507 = vld [vmem:[#allocation7 + $0x30] sm:$0xff]
    %v508 = vld [vmem:[#allocation7 + $0x38] sm:$0xff]
    %v509 = vld [vmem:[#allocation7 + $0x40] sm:$0xff]
    %v510 = vld [vmem:[#allocation7 + $0x48] sm:$0xff]
    %v511 = vld [vmem:[#allocation7 + $0x50] sm:$0xff]
    %v512 = vld [vmem:[#allocation7 + $0x58] sm:$0xff]
    %v513 = vld [vmem:[#allocation7 + $0x60] sm:$0xff]
    %v514 = vld [vmem:[#allocation7 + $0x68] sm:$0xff]
    %v515 = vld [vmem:[#allocation7 + $0x70] sm:$0xff]
    %v516 = vld [vmem:[#allocation7 + $0x78] sm:$0xff]
    %v517 = vld [vmem:[%s3] sm:$0xff]
    %v518 = vld [vmem:[#allocation2] sm:$0xff]
    %519 = vmatprep.subr.mxu0 0.0
    %520 = vmatpush1.msra.mxu0 %v501
    %521 = vmatprep.subr.mxu0 0.0
    %522 = vmatpush1.msra.mxu0 %v502
    %523 = vmatprep.subr.mxu0 0.0
    %524 = vmatpush1.msra.mxu0 %v503
    %525 = vmatprep.subr.mxu0 0.0
    %526 = vmatpush1.msra.mxu0 %v504
    %527 = vmatprep.subr.mxu0 0.0
    %528 = vmatpush1.msra.mxu0 %v505
    %529 = vmatprep.subr.mxu0 0.0
    %530 = vmatpush1.msra.mxu0 %v506
    %531 = vmatprep.subr.mxu0 0.0
    %532 = vmatpush1.msra.mxu0 %v507
    %533 = vmatprep.subr.mxu0 0.0
    %534 = vmatpush1.msra.mxu0 %v508
    %535 = vmatprep.subr.mxu0 0.0
    %536 = vmatpush1.msra.mxu0 %v509
    %537 = vmatprep.subr.mxu0 0.0
    %538 = vmatpush1.msra.mxu0 %v510
    %539 = vmatprep.subr.mxu0 0.0
    %540 = vmatpush1.msra.mxu0 %v511
    %541 = vmatprep.subr.mxu0 0.0
    %542 = vmatpush1.msra.mxu0 %v512
    %543 = vmatprep.subr.mxu0 0.0
    %544 = vmatpush1.msra.mxu0 %v513
    %545 = vmatprep.subr.mxu0 0.0
    %546 = vmatpush1.msra.mxu0 %v514
    %547 = vmatprep.subr.mxu0 0.0
    %548 = vmatpush1.msra.mxu0 %v515
    %549 = vmatprep.subr.mxu0 0.0
    %550 = vmatpush1.msra.mxu0 %v516
    %551 = vmatprep.subr.mxu0 0.0
    %552 = vmatpush1.msra.mxu0 0.0
    %553 = vmatprep.subr.mxu0 0.0
    %554 = vmatpush1.msra.mxu0 0.0
    %555 = vmatprep.subr.mxu0 0.0
    %556 = vmatpush1.msra.mxu0 0.0
    %557 = vmatprep.subr.mxu0 0.0
    %558 = vmatpush1.msra.mxu0 0.0
    %559 = vmatprep.subr.mxu0 0.0
    %560 = vmatpush1.msra.mxu0 0.0
    %561 = vmatprep.subr.mxu0 0.0
    %562 = vmatpush1.msra.mxu0 0.0
    %563 = vmatprep.subr.mxu0 0.0
    %564 = vmatpush1.msra.mxu0 0.0
    %565 = vmatprep.subr.mxu0 0.0
    %566 = vmatpush1.msra.mxu0 0.0
    %567 = vmatprep.subr.mxu0 0.0
    %568 = vmatpush1.msra.mxu0 0.0
    %569 = vmatprep.subr.mxu0 0.0
    %570 = vmatpush1.msra.mxu0 0.0
    %571 = vmatprep.subr.mxu0 0.0
    %572 = vmatpush1.msra.mxu0 0.0
    %573 = vmatprep.subr.mxu0 0.0
    %574 = vmatpush1.msra.mxu0 0.0
    %575 = vmatprep.subr.mxu0 0.0
    %576 = vmatpush1.msra.mxu0 0.0
    %577 = vmatprep.subr.mxu0 0.0
    %578 = vmatpush1.msra.mxu0 0.0
    %579 = vmatprep.subr.mxu0 0.0
    %580 = vmatpush1.msra.mxu0 0.0
    %581 = vmatprep.subr.mxu0 0.0
    %582 = vmatpush1.msra.mxu0 0.0
    %583 = vmatprep.mubr.f32.mxu0 0.0
    %584 = vmatmul.mubr.f32.gmra.mrb[0].mxu0 %v517
    %v585 = vpop.f32.mrb[0].mxu0
    %v586 = vadd.f32 0.0, %v585
    %v587 = vpop.f32.mrb[0].mxu0
    %588 = vdwg.mxu0
    %v589 = vadd.f32 %v518, %v586
    %v590 = vtanh.pop %v589
    %v591 = vld [vmem:[#allocation3] sm:$0xff]
    %v592 = vsub.f32 %v590, %v517
    %v593 = vmul.f32 %v591, %v592
    %v594 = vadd.f32 %v517, %v593
    %s595 = scalar_lea.vmem [#allocation2], 8
    %v596 = vld [vmem:[%s595] sm:$0xff]
    %597 = vmatprep.subr.mxu0 0.0
    %598 = vmatpush1.msra.mxu0 %v501
    %599 = vmatprep.subr.mxu0 0.0
    %600 = vmatpush1.msra.mxu0 %v502
    %601 = vmatprep.subr.mxu0 0.0
    %602 = vmatpush1.msra.mxu0 %v503
    %603 = vmatprep.subr.mxu0 0.0
    %604 = vmatpush1.msra.mxu0 %v504
    %605 = vmatprep.subr.mxu0 0.0
    %606 = vmatpush1.msra.mxu0 %v505
    %607 = vmatprep.subr.mxu0 0.0
    %608 = vmatpush1.msra.mxu0 %v506
    %609 = vmatprep.subr.mxu0 0.0
    %610 = vmatpush1.msra.mxu0 %v507
    %611 = vmatprep.subr.mxu0 0.0
    %612 = vmatpush1.msra.mxu0 %v508
    %613 = vmatprep.subr.mxu0 0.0
    %614 = vmatpush1.msra.mxu0 %v509
    %615 = vmatprep.subr.mxu0 0.0
    %616 = vmatpush1.msra.mxu0 %v510
    %617 = vmatprep.subr.mxu0 0.0
    %618 = vmatpush1.msra.mxu0 %v511
    %619 = vmatprep.subr.mxu0 0.0
    %620 = vmatpush1.msra.mxu0 %v512
    %621 = vmatprep.subr.mxu0 0.0
    %622 = vmatpush1.msra.mxu0 %v513
    %623 = vmatprep.subr.mxu0 0.0
    %624 = vmatpush1.msra.mxu0 %v514
    %625 = vmatprep.subr.mxu0 0.0
    %626 = vmatpush1.msra.mxu0 %v515
    %627 = vmatprep.subr.mxu0 0.0
    %628 = vmatpush1.msra.mxu0 %v516
    %629 = vmatprep.subr.mxu0 0.0
    %630 = vmatpush1.msra.mxu0 0.0
    %631 = vmatprep.subr.mxu0 0.0
    %632 = vmatpush1.msra.mxu0 0.0
    %633 = vmatprep.subr.mxu0 0.0
    %634 = vmatpush1.msra.mxu0 0.0
    %635 = vmatprep.subr.mxu0 0.0
    %636 = vmatpush1.msra.mxu0 0.0
    %637 = vmatprep.subr.mxu0 0.0
    %638 = vmatpush1.msra.mxu0 0.0
    %639 = vmatprep.subr.mxu0 0.0
    %640 = vmatpush1.msra.mxu0 0.0
    %641 = vmatprep.subr.mxu0 0.0
    %642 = vmatpush1.msra.mxu0 0.0
    %643 = vmatprep.subr.mxu0 0.0
    %644 = vmatpush1.msra.mxu0 0.0
    %645 = vmatprep.subr.mxu0 0.0
    %646 = vmatpush1.msra.mxu0 0.0
    %647 = vmatprep.subr.mxu0 0.0
    %648 = vmatpush1.msra.mxu0 0.0
    %649 = vmatprep.subr.mxu0 0.0
    %650 = vmatpush1.msra.mxu0 0.0
    %651 = vmatprep.subr.mxu0 0.0
    %652 = vmatpush1.msra.mxu0 0.0
    %653 = vmatprep.subr.mxu0 0.0
    %654 = vmatpush1.msra.mxu0 0.0
    %655 = vmatprep.subr.mxu0 0.0
    %656 = vmatpush1.msra.mxu0 0.0
    %657 = vmatprep.subr.mxu0 0.0
    %658 = vmatpush1.msra.mxu0 0.0
    %659 = vmatprep.subr.mxu0 0.0
    %660 = vmatpush1.msra.mxu0 0.0
    %661 = vmatprep.mubr.f32.mxu0 0.0
    %662 = vmatmul.mubr.f32.gmra.mrb[0].mxu0 %v594
    %v663 = vpop.f32.mrb[0].mxu0
    %v664 = vadd.f32 0.0, %v663
    %v665 = vpop.f32.mrb[0].mxu0
    %666 = vdwg.mxu0
    %v667 = vadd.f32 %v596, %v664
    %v668 = vtanh.pop %v667
    %s669 = scalar_lea.vmem [#allocation3], 8
    %v670 = vld [vmem:[%s669] sm:$0xff]
    %v671 = vsub.f32 %v668, %v594
    %v672 = vmul.f32 %v670, %v671
    %v673 = vadd.f32 %v594, %v672
    %s674 = scalar_lea.vmem [#allocation2], 16
    %v675 = vld [vmem:[%s674] sm:$0xff]
    %676 = vmatprep.subr.mxu0 0.0
    %677 = vmatpush1.msra.mxu0 %v501
    %678 = vmatprep.subr.mxu0 0.0
    %679 = vmatpush1.msra.mxu0 %v502
    %680 = vmatprep.subr.mxu0 0.0
    %681 = vmatpush1.msra.mxu0 %v503
    %682 = vmatprep.subr.mxu0 0.0
    %683 = vmatpush1.msra.mxu0 %v504
    %684 = vmatprep.subr.mxu0 0.0
    %685 = vmatpush1.msra.mxu0 %v505
    %686 = vmatprep.subr.mxu0 0.0
    %687 = vmatpush1.msra.mxu0 %v506
    %688 = vmatprep.subr.mxu0 0.0
    %689 = vmatpush1.msra.mxu0 %v507
    %690 = vmatprep.subr.mxu0 0.0
    %691 = vmatpush1.msra.mxu0 %v508
    %692 = vmatprep.subr.mxu0 0.0
    %693 = vmatpush1.msra.mxu0 %v509
    %694 = vmatprep.subr.mxu0 0.0
    %695 = vmatpush1.msra.mxu0 %v510
    %696 = vmatprep.subr.mxu0 0.0
    %697 = vmatpush1.msra.mxu0 %v511
    %698 = vmatprep.subr.mxu0 0.0
    %699 = vmatpush1.msra.mxu0 %v512
    %700 = vmatprep.subr.mxu0 0.0
    %701 = vmatpush1.msra.mxu0 %v513
    %702 = vmatprep.subr.mxu0 0.0
    %703 = vmatpush1.msra.mxu0 %v514
    %704 = vmatprep.subr.mxu0 0.0
    %705 = vmatpush1.msra.mxu0 %v515
    %706 = vmatprep.subr.mxu0 0.0
    %707 = vmatpush1.msra.mxu0 %v516
    %708 = vmatprep.subr.mxu0 0.0
    %709 = vmatpush1.msra.mxu0 0.0
    %710 = vmatprep.subr.mxu0 0.0
    %711 = vmatpush1.msra.mxu0 0.0
    %712 = vmatprep.subr.mxu0 0.0
    %713 = vmatpush1.msra.mxu0 0.0
    %714 = vmatprep.subr.mxu0 0.0
    %715 = vmatpush1.msra.mxu0 0.0
    %716 = vmatprep.subr.mxu0 0.0
    %717 = vmatpush1.msra.mxu0 0.0
    %718 = vmatprep.subr.mxu0 0.0
    %719 = vmatpush1.msra.mxu0 0.0
    %720 = vmatprep.subr.mxu0 0.0
    %721 = vmatpush1.msra.mxu0 0.0
    %722 = vmatprep.subr.mxu0 0.0
    %723 = vmatpush1.msra.mxu0 0.0
    %724 = vmatprep.subr.mxu0 0.0
    %725 = vmatpush1.msra.mxu0 0.0
    %726 = vmatprep.subr.mxu0 0.0
    %727 = vmatpush1.msra.mxu0 0.0
    %728 = vmatprep.subr.mxu0 0.0
    %729 = vmatpush1.msra.mxu0 0.0
    %730 = vmatprep.subr.mxu0 0.0
    %731 = vmatpush1.msra.mxu0 0.0
    %732 = vmatprep.subr.mxu0 0.0
    %733 = vmatpush1.msra.mxu0 0.0
    %734 = vmatprep.subr.mxu0 0.0
    %735 = vmatpush1.msra.mxu0 0.0
    %736 = vmatprep.subr.mxu0 0.0
    %737 = vmatpush1.msra.mxu0 0.0
    %738 = vmatprep.subr.mxu0 0.0
    %739 = vmatpush1.msra.mxu0 0.0
    %740 = vmatprep.mubr.f32.mxu0 0.0
    %741 = vmatmul.mubr.f32.gmra.mrb[0].mxu0 %v673
    %v742 = vpop.f32.mrb[0].mxu0
    %v743 = vadd.f32 0.0, %v742
    %v744 = vpop.f32.mrb[0].mxu0
    %745 = vdwg.mxu0
    %v746 = vadd.f32 %v675, %v743
    %v747 = vtanh.pop %v746
    %s748 = scalar_lea.vmem [#allocation3], 16
    %v749 = vld [vmem:[%s748] sm:$0xff]
    %v750 = vsub.f32 %v747, %v673
    %v751 = vmul.f32 %v749, %v750
    %v752 = vadd.f32 %v673, %v751
    %s753 = scalar_lea.vmem [#allocation2], 24
    %v754 = vld [vmem:[%s753] sm:$0xff]
    %755 = vmatprep.subr.mxu0 0.0
    %756 = vmatpush1.msra.mxu0 %v501
    %757 = vmatprep.subr.mxu0 0.0
    %758 = vmatpush1.msra.mxu0 %v502
    %759 = vmatprep.subr.mxu0 0.0
    %760 = vmatpush1.msra.mxu0 %v503
    %761 = vmatprep.subr.mxu0 0.0
    %762 = vmatpush1.msra.mxu0 %v504
    %763 = vmatprep.subr.mxu0 0.0
    %764 = vmatpush1.msra.mxu0 %v505
    %765 = vmatprep.subr.mxu0 0.0
    %766 = vmatpush1.msra.mxu0 %v506
    %767 = vmatprep.subr.mxu0 0.0
    %768 = vmatpush1.msra.mxu0 %v507
    %769 = vmatprep.subr.mxu0 0.0
    %770 = vmatpush1.msra.mxu0 %v508
    %771 = vmatprep.subr.mxu0 0.0
    %772 = vmatpush1.msra.mxu0 %v509
    %773 = vmatprep.subr.mxu0 0.0
    %774 = vmatpush1.msra.mxu0 %v510
    %775 = vmatprep.subr.mxu0 0.0
    %776 = vmatpush1.msra.mxu0 %v511
    %777 = vmatprep.subr.mxu0 0.0
    %778 = vmatpush1.msra.mxu0 %v512
    %779 = vmatprep.subr.mxu0 0.0
    %780 = vmatpush1.msra.mxu0 %v513
    %781 = vmatprep.subr.mxu0 0.0
    %782 = vmatpush1.msra.mxu0 %v514
    %783 = vmatprep.subr.mxu0 0.0
    %784 = vmatpush1.msra.mxu0 %v515
    %785 = vmatprep.subr.mxu0 0.0
    %786 = vmatpush1.msra.mxu0 %v516
    %787 = vmatprep.subr.mxu0 0.0
    %788 = vmatpush1.msra.mxu0 0.0
    %789 = vmatprep.subr.mxu0 0.0
    %790 = vmatpush1.msra.mxu0 0.0
    %791 = vmatprep.subr.mxu0 0.0
    %792 = vmatpush1.msra.mxu0 0.0
    %793 = vmatprep.subr.mxu0 0.0
    %794 = vmatpush1.msra.mxu0 0.0
    %795 = vmatprep.subr.mxu0 0.0
    %796 = vmatpush1.msra.mxu0 0.0
    %797 = vmatprep.subr.mxu0 0.0
    %798 = vmatpush1.msra.mxu0 0.0
    %799 = vmatprep.subr.mxu0 0.0
    %800 = vmatpush1.msra.mxu0 0.0
    %801 = vmatprep.subr.mxu0 0.0
    %802 = vmatpush1.msra.mxu0 0.0
    %803 = vmatprep.subr.mxu0 0.0
    %804 = vmatpush1.msra.mxu0 0.0
    %805 = vmatprep.subr.mxu0 0.0
    %806 = vmatpush1.msra.mxu0 0.0
    %807 = vmatprep.subr.mxu0 0.0
    %808 = vmatpush1.msra.mxu0 0.0
    %809 = vmatprep.subr.mxu0 0.0
    %810 = vmatpush1.msra.mxu0 0.0
    %811 = vmatprep.subr.mxu0 0.0
    %812 = vmatpush1.msra.mxu0 0.0
    %813 = vmatprep.subr.mxu0 0.0
    %814 = vmatpush1.msra.mxu0 0.0
    %815 = vmatprep.subr.mxu0 0.0
    %816 = vmatpush1.msra.mxu0 0.0
    %817 = vmatprep.subr.mxu0 0.0
    %818 = vmatpush1.msra.mxu0 0.0
    %819 = vmatprep.mubr.f32.mxu0 0.0
    %820 = vmatmul.mubr.f32.gmra.mrb[0].mxu0 %v752
    %v821 = vpop.f32.mrb[0].mxu0
    %v822 = vadd.f32 0.0, %v821
    %v823 = vpop.f32.mrb[0].mxu0
    %824 = vdwg.mxu0
    %v825 = vadd.f32 %v754, %v822
    %v826 = vtanh.pop %v825
    %s827 = scalar_lea.vmem [#allocation3], 24
    %v828 = vld [vmem:[%s827] sm:$0xff]
    %v829 = vsub.f32 %v826, %v752
    %v830 = vmul.f32 %v828, %v829
    %v831 = vadd.f32 %v752, %v830
    %s832 = scalar_lea.vmem [#allocation2], 32
    %v833 = vld [vmem:[%s832] sm:$0xff]
    %834 = vmatprep.subr.mxu0 0.0
    %835 = vmatpush1.msra.mxu0 %v501
    %836 = vmatprep.subr.mxu0 0.0
    %837 = vmatpush1.msra.mxu0 %v502
    %838 = vmatprep.subr.mxu0 0.0
    %839 = vmatpush1.msra.mxu0 %v503
    %840 = vmatprep.subr.mxu0 0.0
    %841 = vmatpush1.msra.mxu0 %v504
    %842 = vmatprep.subr.mxu0 0.0
    %843 = vmatpush1.msra.mxu0 %v505
    %844 = vmatprep.subr.mxu0 0.0
    %845 = vmatpush1.msra.mxu0 %v506
    %846 = vmatprep.subr.mxu0 0.0
    %847 = vmatpush1.msra.mxu0 %v507
    %848 = vmatprep.subr.mxu0 0.0
    %849 = vmatpush1.msra.mxu0 %v508
    %850 = vmatprep.subr.mxu0 0.0
    %851 = vmatpush1.msra.mxu0 %v509
    %852 = vmatprep.subr.mxu0 0.0
    %853 = vmatpush1.msra.mxu0 %v510
    %854 = vmatprep.subr.mxu0 0.0
    %855 = vmatpush1.msra.mxu0 %v511
    %856 = vmatprep.subr.mxu0 0.0
    %857 = vmatpush1.msra.mxu0 %v512
    %858 = vmatprep.subr.mxu0 0.0
    %859 = vmatpush1.msra.mxu0 %v513
    %860 = vmatprep.subr.mxu0 0.0
    %861 = vmatpush1.msra.mxu0 %v514
    %862 = vmatprep.subr.mxu0 0.0
    %863 = vmatpush1.msra.mxu0 %v515
    %864 = vmatprep.subr.mxu0 0.0
    %865 = vmatpush1.msra.mxu0 %v516
    %866 = vmatprep.subr.mxu0 0.0
    %867 = vmatpush1.msra.mxu0 0.0
    %868 = vmatprep.subr.mxu0 0.0
    %869 = vmatpush1.msra.mxu0 0.0
    %870 = vmatprep.subr.mxu0 0.0
    %871 = vmatpush1.msra.mxu0 0.0
    %872 = vmatprep.subr.mxu0 0.0
    %873 = vmatpush1.msra.mxu0 0.0
    %874 = vmatprep.subr.mxu0 0.0
    %875 = vmatpush1.msra.mxu0 0.0
    %876 = vmatprep.subr.mxu0 0.0
    %877 = vmatpush1.msra.mxu0 0.0
    %878 = vmatprep.subr.mxu0 0.0
    %879 = vmatpush1.msra.mxu0 0.0
    %880 = vmatprep.subr.mxu0 0.0
    %881 = vmatpush1.msra.mxu0 0.0
    %882 = vmatprep.subr.mxu0 0.0
    %883 = vmatpush1.msra.mxu0 0.0
    %884 = vmatprep.subr.mxu0 0.0
    %885 = vmatpush1.msra.mxu0 0.0
    %886 = vmatprep.subr.mxu0 0.0
    %887 = vmatpush1.msra.mxu0 0.0
    %888 = vmatprep.subr.mxu0 0.0
    %889 = vmatpush1.msra.mxu0 0.0
    %890 = vmatprep.subr.mxu0 0.0
    %891 = vmatpush1.msra.mxu0 0.0
    %892 = vmatprep.subr.mxu0 0.0
    %893 = vmatpush1.msra.mxu0 0.0
    %894 = vmatprep.subr.mxu0 0.0
    %895 = vmatpush1.msra.mxu0 0.0
    %896 = vmatprep.subr.mxu0 0.0
    %897 = vmatpush1.msra.mxu0 0.0
    %898 = vmatprep.mubr.f32.mxu0 0.0
    %899 = vmatmul.mubr.f32.gmra.mrb[0].mxu0 %v831
    %v900 = vpop.f32.mrb[0].mxu0
    %v901 = vadd.f32 0.0, %v900
    %v902 = vpop.f32.mrb[0].mxu0
    %903 = vdwg.mxu0
    %v904 = vadd.f32 %v833, %v901
    %v905 = vtanh.pop %v904
    %s906 = scalar_lea.vmem [#allocation3], 32
    %v907 = vld [vmem:[%s906] sm:$0xff]
    %v908 = vsub.f32 %v905, %v831
    %v909 = vmul.f32 %v907, %v908
    %v910 = vadd.f32 %v831, %v909
    %s911 = scalar_lea.vmem [#allocation2], 40
    %v912 = vld [vmem:[%s911] sm:$0xff]
    %913 = vmatprep.subr.mxu0 0.0
    %914 = vmatpush1.msra.mxu0 %v501
    %915 = vmatprep.subr.mxu0 0.0
    %916 = vmatpush1.msra.mxu0 %v502
    %917 = vmatprep.subr.mxu0 0.0
    %918 = vmatpush1.msra.mxu0 %v503
    %919 = vmatprep.subr.mxu0 0.0
    %920 = vmatpush1.msra.mxu0 %v504
    %921 = vmatprep.subr.mxu0 0.0
    %922 = vmatpush1.msra.mxu0 %v505
    %923 = vmatprep.subr.mxu0 0.0
    %924 = vmatpush1.msra.mxu0 %v506
    %925 = vmatprep.subr.mxu0 0.0
    %926 = vmatpush1.msra.mxu0 %v507
    %927 = vmatprep.subr.mxu0 0.0
    %928 = vmatpush1.msra.mxu0 %v508
    %929 = vmatprep.subr.mxu0 0.0
    %930 = vmatpush1.msra.mxu0 %v509
    %931 = vmatprep.subr.mxu0 0.0
    %932 = vmatpush1.msra.mxu0 %v510
    %933 = vmatprep.subr.mxu0 0.0
    %934 = vmatpush1.msra.mxu0 %v511
    %935 = vmatprep.subr.mxu0 0.0
    %936 = vmatpush1.msra.mxu0 %v512
    %937 = vmatprep.subr.mxu0 0.0
    %938 = vmatpush1.msra.mxu0 %v513
    %939 = vmatprep.subr.mxu0 0.0
    %940 = vmatpush1.msra.mxu0 %v514
    %941 = vmatprep.subr.mxu0 0.0
    %942 = vmatpush1.msra.mxu0 %v515
    %943 = vmatprep.subr.mxu0 0.0
    %944 = vmatpush1.msra.mxu0 %v516
    %945 = vmatprep.subr.mxu0 0.0
    %946 = vmatpush1.msra.mxu0 0.0
    %947 = vmatprep.subr.mxu0 0.0
    %948 = vmatpush1.msra.mxu0 0.0
    %949 = vmatprep.subr.mxu0 0.0
    %950 = vmatpush1.msra.mxu0 0.0
    %951 = vmatprep.subr.mxu0 0.0
    %952 = vmatpush1.msra.mxu0 0.0
    %953 = vmatprep.subr.mxu0 0.0
    %954 = vmatpush1.msra.mxu0 0.0
    %955 = vmatprep.subr.mxu0 0.0
    %956 = vmatpush1.msra.mxu0 0.0
    %957 = vmatprep.subr.mxu0 0.0
    %958 = vmatpush1.msra.mxu0 0.0
    %959 = vmatprep.subr.mxu0 0.0
    %960 = vmatpush1.msra.mxu0 0.0
    %961 = vmatprep.subr.mxu0 0.0
    %962 = vmatpush1.msra.mxu0 0.0
    %963 = vmatprep.subr.mxu0 0.0
    %964 = vmatpush1.msra.mxu0 0.0
    %965 = vmatprep.subr.mxu0 0.0
    %966 = vmatpush1.msra.mxu0 0.0
    %967 = vmatprep.subr.mxu0 0.0
    %968 = vmatpush1.msra.mxu0 0.0
    %969 = vmatprep.subr.mxu0 0.0
    %970 = vmatpush1.msra.mxu0 0.0
    %971 = vmatprep.subr.mxu0 0.0
    %972 = vmatpush1.msra.mxu0 0.0
    %973 = vmatprep.subr.mxu0 0.0
    %974 = vmatpush1.msra.mxu0 0.0
    %975 = vmatprep.subr.mxu0 0.0
    %976 = vmatpush1.msra.mxu0 0.0
    %977 = vmatprep.mubr.f32.mxu0 0.0
    %978 = vmatmul.mubr.f32.gmra.mrb[0].mxu0 %v910
    %v979 = vpop.f32.mrb[0].mxu0
    %v980 = vadd.f32 0.0, %v979
    %v981 = vpop.f32.mrb[0].mxu0
    %982 = vdwg.mxu0
    %v983 = vadd.f32 %v912, %v980
    %v984 = vtanh.pop %v983
    %s985 = scalar_lea.vmem [#allocation3], 40
    %v986 = vld [vmem:[%s985] sm:$0xff]
    %v987 = vsub.f32 %v984, %v910
    %v988 = vmul.f32 %v986, %v987
    %v989 = vadd.f32 %v910, %v988
    %s990 = scalar_lea.vmem [#allocation2], 48
    %v991 = vld [vmem:[%s990] sm:$0xff]
    %992 = vmatprep.subr.mxu0 0.0
    %993 = vmatpush1.msra.mxu0 %v501
    %994 = vmatprep.subr.mxu0 0.0
    %995 = vmatpush1.msra.mxu0 %v502
    %996 = vmatprep.subr.mxu0 0.0
    %997 = vmatpush1.msra.mxu0 %v503
    %998 = vmatprep.subr.mxu0 0.0
    %999 = vmatpush1.msra.mxu0 %v504
    %1000 = vmatprep.subr.mxu0 0.0
    %1001 = vmatpush1.msra.mxu0 %v505
    %1002 = vmatprep.subr.mxu0 0.0
    %1003 = vmatpush1.msra.mxu0 %v506
    %1004 = vmatprep.subr.mxu0 0.0
    %1005 = vmatpush1.msra.mxu0 %v507
    %1006 = vmatprep.subr.mxu0 0.0
    %1007 = vmatpush1.msra.mxu0 %v508
    %1008 = vmatprep.subr.mxu0 0.0
    %1009 = vmatpush1.msra.mxu0 %v509
    %1010 = vmatprep.subr.mxu0 0.0
    %1011 = vmatpush1.msra.mxu0 %v510
    %1012 = vmatprep.subr.mxu0 0.0
    %1013 = vmatpush1.msra.mxu0 %v511
    %1014 = vmatprep.subr.mxu0 0.0
    %1015 = vmatpush1.msra.mxu0 %v512
    %1016 = vmatprep.subr.mxu0 0.0
    %1017 = vmatpush1.msra.mxu0 %v513
    %1018 = vmatprep.subr.mxu0 0.0
    %1019 = vmatpush1.msra.mxu0 %v514
    %1020 = vmatprep.subr.mxu0 0.0
    %1021 = vmatpush1.msra.mxu0 %v515
    %1022 = vmatprep.subr.mxu0 0.0
    %1023 = vmatpush1.msra.mxu0 %v516
    %1024 = vmatprep.subr.mxu0 0.0
    %1025 = vmatpush1.msra.mxu0 0.0
    %1026 = vmatprep.subr.mxu0 0.0
    %1027 = vmatpush1.msra.mxu0 0.0
    %1028 = vmatprep.subr.mxu0 0.0
    %1029 = vmatpush1.msra.mxu0 0.0
    %1030 = vmatprep.subr.mxu0 0.0
    %1031 = vmatpush1.msra.mxu0 0.0
    %1032 = vmatprep.subr.mxu0 0.0
    %1033 = vmatpush1.msra.mxu0 0.0
    %1034 = vmatprep.subr.mxu0 0.0
    %1035 = vmatpush1.msra.mxu0 0.0
    %1036 = vmatprep.subr.mxu0 0.0
    %1037 = vmatpush1.msra.mxu0 0.0
    %1038 = vmatprep.subr.mxu0 0.0
    %1039 = vmatpush1.msra.mxu0 0.0
    %1040 = vmatprep.subr.mxu0 0.0
    %1041 = vmatpush1.msra.mxu0 0.0
    %1042 = vmatprep.subr.mxu0 0.0
    %1043 = vmatpush1.msra.mxu0 0.0
    %1044 = vmatprep.subr.mxu0 0.0
    %1045 = vmatpush1.msra.mxu0 0.0
    %1046 = vmatprep.subr.mxu0 0.0
    %1047 = vmatpush1.msra.mxu0 0.0
    %1048 = vmatprep.subr.mxu0 0.0
    %1049 = vmatpush1.msra.mxu0 0.0
    %1050 = vmatprep.subr.mxu0 0.0
    %1051 = vmatpush1.msra.mxu0 0.0
    %1052 = vmatprep.subr.mxu0 0.0
    %1053 = vmatpush1.msra.mxu0 0.0
    %1054 = vmatprep.subr.mxu0 0.0
    %1055 = vmatpush1.msra.mxu0 0.0
    %1056 = vmatprep.mubr.f32.mxu0 0.0
    %1057 = vmatmul.mubr.f32.gmra.mrb[0].mxu0 %v989
    %v1058 = vpop.f32.mrb[0].mxu0
    %v1059 = vadd.f32 0.0, %v1058
    %v1060 = vpop.f32.mrb[0].mxu0
    %1061 = vdwg.mxu0
    %v1062 = vadd.f32 %v991, %v1059
    %v1063 = vtanh.pop %v1062
    %s1064 = scalar_lea.vmem [#allocation3], 48
    %v1065 = vld [vmem:[%s1064] sm:$0xff]
    %v1066 = vsub.f32 %v1063, %v989
    %v1067 = vmul.f32 %v1065, %v1066
    %v1068 = vadd.f32 %v989, %v1067
    %s1069 = scalar_lea.vmem [#allocation2], 56
    %v1070 = vld [vmem:[%s1069] sm:$0xff]
    %1071 = vmatprep.subr.mxu0 0.0
    %1072 = vmatpush1.msra.mxu0 %v501
    %1073 = vmatprep.subr.mxu0 0.0
    %1074 = vmatpush1.msra.mxu0 %v502
    %1075 = vmatprep.subr.mxu0 0.0
    %1076 = vmatpush1.msra.mxu0 %v503
    %1077 = vmatprep.subr.mxu0 0.0
    %1078 = vmatpush1.msra.mxu0 %v504
    %1079 = vmatprep.subr.mxu0 0.0
    %1080 = vmatpush1.msra.mxu0 %v505
    %1081 = vmatprep.subr.mxu0 0.0
    %1082 = vmatpush1.msra.mxu0 %v506
    %1083 = vmatprep.subr.mxu0 0.0
    %1084 = vmatpush1.msra.mxu0 %v507
    %1085 = vmatprep.subr.mxu0 0.0
    %1086 = vmatpush1.msra.mxu0 %v508
    %1087 = vmatprep.subr.mxu0 0.0
    %1088 = vmatpush1.msra.mxu0 %v509
    %1089 = vmatprep.subr.mxu0 0.0
    %1090 = vmatpush1.msra.mxu0 %v510
    %1091 = vmatprep.subr.mxu0 0.0
    %1092 = vmatpush1.msra.mxu0 %v511
    %1093 = vmatprep.subr.mxu0 0.0
    %1094 = vmatpush1.msra.mxu0 %v512
    %1095 = vmatprep.subr.mxu0 0.0
    %1096 = vmatpush1.msra.mxu0 %v513
    %1097 = vmatprep.subr.mxu0 0.0
    %1098 = vmatpush1.msra.mxu0 %v514
    %1099 = vmatprep.subr.mxu0 0.0
    %1100 = vmatpush1.msra.mxu0 %v515
    %1101 = vmatprep.subr.mxu0 0.0
    %1102 = vmatpush1.msra.mxu0 %v516
    %1103 = vmatprep.subr.mxu0 0.0
    %1104 = vmatpush1.msra.mxu0 0.0
    %1105 = vmatprep.subr.mxu0 0.0
    %1106 = vmatpush1.msra.mxu0 0.0
    %1107 = vmatprep.subr.mxu0 0.0
    %1108 = vmatpush1.msra.mxu0 0.0
    %1109 = vmatprep.subr.mxu0 0.0
    %1110 = vmatpush1.msra.mxu0 0.0
    %1111 = vmatprep.subr.mxu0 0.0
    %1112 = vmatpush1.msra.mxu0 0.0
    %1113 = vmatprep.subr.mxu0 0.0
    %1114 = vmatpush1.msra.mxu0 0.0
    %1115 = vmatprep.subr.mxu0 0.0
    %1116 = vmatpush1.msra.mxu0 0.0
    %1117 = vmatprep.subr.mxu0 0.0
    %1118 = vmatpush1.msra.mxu0 0.0
    %1119 = vmatprep.subr.mxu0 0.0
    %1120 = vmatpush1.msra.mxu0 0.0
    %1121 = vmatprep.subr.mxu0 0.0
    %1122 = vmatpush1.msra.mxu0 0.0
    %1123 = vmatprep.subr.mxu0 0.0
    %1124 = vmatpush1.msra.mxu0 0.0
    %1125 = vmatprep.subr.mxu0 0.0
    %1126 = vmatpush1.msra.mxu0 0.0
    %1127 = vmatprep.subr.mxu0 0.0
    %1128 = vmatpush1.msra.mxu0 0.0
    %1129 = vmatprep.subr.mxu0 0.0
    %1130 = vmatpush1.msra.mxu0 0.0
    %1131 = vmatprep.subr.mxu0 0.0
    %1132 = vmatpush1.msra.mxu0 0.0
    %1133 = vmatprep.subr.mxu0 0.0
    %1134 = vmatpush1.msra.mxu0 0.0
    %1135 = vmatprep.mubr.f32.mxu0 0.0
    %1136 = vmatmul.mubr.f32.gmra.mrb[0].mxu0 %v1068
    %v1137 = vpop.f32.mrb[0].mxu0
    %v1138 = vadd.f32 0.0, %v1137
    %v1139 = vpop.f32.mrb[0].mxu0
    %1140 = vdwg.mxu0
    %v1141 = vadd.f32 %v1070, %v1138
    %v1142 = vtanh.pop %v1141
    %s1143 = scalar_lea.vmem [#allocation3], 56
    %v1144 = vld [vmem:[%s1143] sm:$0xff]
    %v1145 = vsub.f32 %v1142, %v1068
    %v1146 = vmul.f32 %v1144, %v1145
    %v1147 = vadd.f32 %v1068, %v1146
    %v1148 = vld [vmem:[%s9] sm:$0xff]
    %v1149 = vld [vmem:[%s9 + $0x8] sm:$0xf]
    %v1150 = vld [vmem:[%s10] sm:$0x1]
    %v1152 = vlaneseq
    %v1153 = vshrl.u32 %v1152, 7
    %v1154 = vsub.s32 0, %v1153
    %v1155 = vrot.slane %v1150, %v1154
    %v1158 = vsel %vm96, %v500, 0
    %v1161 = vsel %vm121, %v1149, 0
    %1163 = vmatprep.subr.mxu0 0.0
    %1164 = vmatpush1.msra.mxu0 %v1148
    %1165 = vmatprep.subr.mxu0 0.0
    %1166 = vmatpush1.msra.mxu0 %v1161
    %1167 = vmatprep.subr.mxu0 0.0
    %1168 = vmatpush1.msra.mxu0 0.0
    %1169 = vmatprep.subr.mxu0 0.0
    %1170 = vmatpush1.msra.mxu0 0.0
    %1171 = vmatprep.subr.mxu0 0.0
    %1172 = vmatpush1.msra.mxu0 0.0
    %1173 = vmatprep.subr.mxu0 0.0
    %1174 = vmatpush1.msra.mxu0 0.0
    %1175 = vmatprep.subr.mxu0 0.0
    %1176 = vmatpush1.msra.mxu0 0.0
    %1177 = vmatprep.subr.mxu0 0.0
    %1178 = vmatpush1.msra.mxu0 0.0
    %1179 = vmatprep.subr.mxu0 0.0
    %1180 = vmatpush1.msra.mxu0 0.0
    %1181 = vmatprep.subr.mxu0 0.0
    %1182 = vmatpush1.msra.mxu0 0.0
    %1183 = vmatprep.subr.mxu0 0.0
    %1184 = vmatpush1.msra.mxu0 0.0
    %1185 = vmatprep.subr.mxu0 0.0
    %1186 = vmatpush1.msra.mxu0 0.0
    %1187 = vmatprep.subr.mxu0 0.0
    %1188 = vmatpush1.msra.mxu0 0.0
    %1189 = vmatprep.subr.mxu0 0.0
    %1190 = vmatpush1.msra.mxu0 0.0
    %1191 = vmatprep.subr.mxu0 0.0
    %1192 = vmatpush1.msra.mxu0 0.0
    %1193 = vmatprep.subr.mxu0 0.0
    %1194 = vmatpush1.msra.mxu0 0.0
    %1195 = vmatprep.subr.mxu0 0.0
    %1196 = vmatpush1.msra.mxu0 0.0
    %1197 = vmatprep.subr.mxu0 0.0
    %1198 = vmatpush1.msra.mxu0 0.0
    %1199 = vmatprep.subr.mxu0 0.0
    %1200 = vmatpush1.msra.mxu0 0.0
    %1201 = vmatprep.subr.mxu0 0.0
    %1202 = vmatpush1.msra.mxu0 0.0
    %1203 = vmatprep.subr.mxu0 0.0
    %1204 = vmatpush1.msra.mxu0 0.0
    %1205 = vmatprep.subr.mxu0 0.0
    %1206 = vmatpush1.msra.mxu0 0.0
    %1207 = vmatprep.subr.mxu0 0.0
    %1208 = vmatpush1.msra.mxu0 0.0
    %1209 = vmatprep.subr.mxu0 0.0
    %1210 = vmatpush1.msra.mxu0 0.0
    %1211 = vmatprep.subr.mxu0 0.0
    %1212 = vmatpush1.msra.mxu0 0.0
    %1213 = vmatprep.subr.mxu0 0.0
    %1214 = vmatpush1.msra.mxu0 0.0
    %1215 = vmatprep.subr.mxu0 0.0
    %1216 = vmatpush1.msra.mxu0 0.0
    %1217 = vmatprep.subr.mxu0 0.0
    %1218 = vmatpush1.msra.mxu0 0.0
    %1219 = vmatprep.subr.mxu0 0.0
    %1220 = vmatpush1.msra.mxu0 0.0
    %1221 = vmatprep.subr.mxu0 0.0
    %1222 = vmatpush1.msra.mxu0 0.0
    %1223 = vmatprep.subr.mxu0 0.0
    %1224 = vmatpush1.msra.mxu0 0.0
    %1225 = vmatprep.subr.mxu0 0.0
    %1226 = vmatpush1.msra.mxu0 0.0
    %1227 = vmatprep.mubr.f32.mxu0 0.0
    %1228 = vmatmul.mubr.f32.gmra.mrb[0].mxu0 %v1158
    %v1229 = vpop.f32.mrb[0].mxu0
    %v1230 = vadd.f32 %v1155, %v1229
    %v1231 = vpop.f32.mrb[0].mxu0
    %1232 = vdwg.mxu0
    %v1233 = vmax.f32 %v1230, 0.0
    %v1234 = vld [vmem:[%s11] sm:$0xff]
    %v1235 = vld [vmem:[%s11 + $0x8] sm:$0xff]
    %v1236 = vld [vmem:[%s11 + $0x10] sm:$0xff]
    %v1237 = vld [vmem:[%s11 + $0x18] sm:$0xff]
    %v1238 = vld [vmem:[%s11 + $0x20] sm:$0xff]
    %v1239 = vld [vmem:[%s11 + $0x28] sm:$0xff]
    %v1240 = vld [vmem:[%s11 + $0x30] sm:$0xff]
    %v1241 = vld [vmem:[%s11 + $0x38] sm:$0xff]
    %v1242 = vld [vmem:[%s11 + $0x40] sm:$0xff]
    %v1243 = vld [vmem:[%s11 + $0x48] sm:$0xff]
    %v1244 = vld [vmem:[%s11 + $0x50] sm:$0xff]
    %v1245 = vld [vmem:[%s11 + $0x58] sm:$0xff]
    %v1246 = vld [vmem:[%s11 + $0x60] sm:$0xff]
    %v1247 = vld [vmem:[%s11 + $0x68] sm:$0xff]
    %v1248 = vld [vmem:[%s11 + $0x70] sm:$0xff]
    %v1249 = vld [vmem:[%s11 + $0x78] sm:$0xff]
    %v1250 = vld [vmem:[%s12] sm:$0xff]
    %v1251 = vld [vmem:[%s12 + $0x8] sm:$0xff]
    %v1252 = vld [vmem:[%s12 + $0x10] sm:$0xff]
    %v1253 = vld [vmem:[%s12 + $0x18] sm:$0xff]
    %v1254 = vld [vmem:[%s12 + $0x20] sm:$0xff]
    %v1255 = vld [vmem:[%s12 + $0x28] sm:$0xff]
    %v1256 = vld [vmem:[%s12 + $0x30] sm:$0xff]
    %v1257 = vld [vmem:[%s12 + $0x38] sm:$0xff]
    %v1258 = vld [vmem:[%s12 + $0x40] sm:$0xff]
    %v1259 = vld [vmem:[%s12 + $0x48] sm:$0xff]
    %v1260 = vld [vmem:[%s12 + $0x50] sm:$0xff]
    %v1261 = vld [vmem:[%s12 + $0x58] sm:$0xff]
    %v1262 = vld [vmem:[%s12 + $0x60] sm:$0xff]
    %v1263 = vld [vmem:[%s12 + $0x68] sm:$0xff]
    %v1264 = vld [vmem:[%s12 + $0x70] sm:$0xff]
    %v1265 = vld [vmem:[%s12 + $0x78] sm:$0xff]
    %1266 = vmatprep.subr.mxu0 0.0
    %1267 = vmatpush1.msra.mxu0 %v1250
    %1268 = vmatprep.subr.mxu0 0.0
    %1269 = vmatpush1.msra.mxu0 %v1251
    %1270 = vmatprep.subr.mxu0 0.0
    %1271 = vmatpush1.msra.mxu0 %v1252
    %1272 = vmatprep.subr.mxu0 0.0
    %1273 = vmatpush1.msra.mxu0 %v1253
    %1274 = vmatprep.subr.mxu0 0.0
    %1275 = vmatpush1.msra.mxu0 %v1254
    %1276 = vmatprep.subr.mxu0 0.0
    %1277 = vmatpush1.msra.mxu0 %v1255
    %1278 = vmatprep.subr.mxu0 0.0
    %1279 = vmatpush1.msra.mxu0 %v1256
    %1280 = vmatprep.subr.mxu0 0.0
    %1281 = vmatpush1.msra.mxu0 %v1257
    %1282 = vmatprep.subr.mxu0 0.0
    %1283 = vmatpush1.msra.mxu0 %v1258
    %1284 = vmatprep.subr.mxu0 0.0
    %1285 = vmatpush1.msra.mxu0 %v1259
    %1286 = vmatprep.subr.mxu0 0.0
    %1287 = vmatpush1.msra.mxu0 %v1260
    %1288 = vmatprep.subr.mxu0 0.0
    %1289 = vmatpush1.msra.mxu0 %v1261
    %1290 = vmatprep.subr.mxu0 0.0
    %1291 = vmatpush1.msra.mxu0 %v1262
    %1292 = vmatprep.subr.mxu0 0.0
    %1293 = vmatpush1.msra.mxu0 %v1263
    %1294 = vmatprep.subr.mxu0 0.0
    %1295 = vmatpush1.msra.mxu0 %v1264
    %1296 = vmatprep.subr.mxu0 0.0
    %1297 = vmatpush1.msra.mxu0 %v1265
    %1298 = vmatprep.subr.mxu0 0.0
    %1299 = vmatpush1.msra.mxu0 0.0
    %1300 = vmatprep.subr.mxu0 0.0
    %1301 = vmatpush1.msra.mxu0 0.0
    %1302 = vmatprep.subr.mxu0 0.0
    %1303 = vmatpush1.msra.mxu0 0.0
    %1304 = vmatprep.subr.mxu0 0.0
    %1305 = vmatpush1.msra.mxu0 0.0
    %1306 = vmatprep.subr.mxu0 0.0
    %1307 = vmatpush1.msra.mxu0 0.0
    %1308 = vmatprep.subr.mxu0 0.0
    %1309 = vmatpush1.msra.mxu0 0.0
    %1310 = vmatprep.subr.mxu0 0.0
    %1311 = vmatpush1.msra.mxu0 0.0
    %1312 = vmatprep.subr.mxu0 0.0
    %1313 = vmatpush1.msra.mxu0 0.0
    %1314 = vmatprep.subr.mxu0 0.0
    %1315 = vmatpush1.msra.mxu0 0.0
    %1316 = vmatprep.subr.mxu0 0.0
    %1317 = vmatpush1.msra.mxu0 0.0
    %1318 = vmatprep.subr.mxu0 0.0
    %1319 = vmatpush1.msra.mxu0 0.0
    %1320 = vmatprep.subr.mxu0 0.0
    %1321 = vmatpush1.msra.mxu0 0.0
    %1322 = vmatprep.subr.mxu0 0.0
    %1323 = vmatpush1.msra.mxu0 0.0
    %1324 = vmatprep.subr.mxu0 0.0
    %1325 = vmatpush1.msra.mxu0 0.0
    %1326 = vmatprep.subr.mxu0 0.0
    %1327 = vmatpush1.msra.mxu0 0.0
    %1328 = vmatprep.subr.mxu0 0.0
    %1329 = vmatpush1.msra.mxu0 0.0
    %1330 = vmatprep.mubr.f32.mxu0 0.0
    %1331 = vmatmul.mubr.f32.gmra.mrb[0].mxu0 %v1147
    %v1332 = vpop.f32.mrb[0].mxu0
    %v1333 = vadd.f32 0.0, %v1332
    %v1334 = vpop.f32.mrb[0].mxu0
    %1335 = vdwg.mxu0
    %1336 = vmatprep.subr.mxu0 0.0
    %1337 = vmatpush1.msra.mxu0 %v1234
    %1338 = vmatprep.subr.mxu0 0.0
    %1339 = vmatpush1.msra.mxu0 %v1235
    %1340 = vmatprep.subr.mxu0 0.0
    %1341 = vmatpush1.msra.mxu0 %v1236
    %1342 = vmatprep.subr.mxu0 0.0
    %1343 = vmatpush1.msra.mxu0 %v1237
    %1344 = vmatprep.subr.mxu0 0.0
    %1345 = vmatpush1.msra.mxu0 %v1238
    %1346 = vmatprep.subr.mxu0 0.0
    %1347 = vmatpush1.msra.mxu0 %v1239
    %1348 = vmatprep.subr.mxu0 0.0
    %1349 = vmatpush1.msra.mxu0 %v1240
    %1350 = vmatprep.subr.mxu0 0.0
    %1351 = vmatpush1.msra.mxu0 %v1241
    %1352 = vmatprep.subr.mxu0 0.0
    %1353 = vmatpush1.msra.mxu0 %v1242
    %1354 = vmatprep.subr.mxu0 0.0
    %1355 = vmatpush1.msra.mxu0 %v1243
    %1356 = vmatprep.subr.mxu0 0.0
    %1357 = vmatpush1.msra.mxu0 %v1244
    %1358 = vmatprep.subr.mxu0 0.0
    %1359 = vmatpush1.msra.mxu0 %v1245
    %1360 = vmatprep.subr.mxu0 0.0
    %1361 = vmatpush1.msra.mxu0 %v1246
    %1362 = vmatprep.subr.mxu0 0.0
    %1363 = vmatpush1.msra.mxu0 %v1247
    %1364 = vmatprep.subr.mxu0 0.0
    %1365 = vmatpush1.msra.mxu0 %v1248
    %1366 = vmatprep.subr.mxu0 0.0
    %1367 = vmatpush1.msra.mxu0 %v1249
    %1368 = vmatprep.subr.mxu0 0.0
    %1369 = vmatpush1.msra.mxu0 0.0
    %1370 = vmatprep.subr.mxu0 0.0
    %1371 = vmatpush1.msra.mxu0 0.0
    %1372 = vmatprep.subr.mxu0 0.0
    %1373 = vmatpush1.msra.mxu0 0.0
    %1374 = vmatprep.subr.mxu0 0.0
    %1375 = vmatpush1.msra.mxu0 0.0
    %1376 = vmatprep.subr.mxu0 0.0
    %1377 = vmatpush1.msra.mxu0 0.0
    %1378 = vmatprep.subr.mxu0 0.0
    %1379 = vmatpush1.msra.mxu0 0.0
    %1380 = vmatprep.subr.mxu0 0.0
    %1381 = vmatpush1.msra.mxu0 0.0
    %1382 = vmatprep.subr.mxu0 0.0
    %1383 = vmatpush1.msra.mxu0 0.0
    %1384 = vmatprep.subr.mxu0 0.0
    %1385 = vmatpush1.msra.mxu0 0.0
    %1386 = vmatprep.subr.mxu0 0.0
    %1387 = vmatpush1.msra.mxu0 0.0
    %1388 = vmatprep.subr.mxu0 0.0
    %1389 = vmatpush1.msra.mxu0 0.0
    %1390 = vmatprep.subr.mxu0 0.0
    %1391 = vmatpush1.msra.mxu0 0.0
    %1392 = vmatprep.subr.mxu0 0.0
    %1393 = vmatpush1.msra.mxu0 0.0
    %1394 = vmatprep.subr.mxu0 0.0
    %1395 = vmatpush1.msra.mxu0 0.0
    %1396 = vmatprep.subr.mxu0 0.0
    %1397 = vmatpush1.msra.mxu0 0.0
    %1398 = vmatprep.subr.mxu0 0.0
    %1399 = vmatpush1.msra.mxu0 0.0
    %1400 = vmatprep.mubr.f32.mxu0 0.0
    %1401 = vmatmul.mubr.f32.gmra.mrb[0].mxu0 %v1233
    %v1402 = vpop.f32.mrb[0].mxu0
    %v1403 = vadd.f32 %v1333, %v1402
    %v1404 = vpop.f32.mrb[0].mxu0
    %1405 = vdwg.mxu0
    %v1406 = vld [vmem:[%s13] sm:$0x1]
    %v1408 = vlaneseq
    %v1409 = vshrl.u32 %v1408, 7
    %v1410 = vsub.s32 0, %v1409
    %v1411 = vrot.slane %v1406, %v1410
    %v1413 = vadd.f32 %v1403, %v1411
    %1414 = vst [vmem:[#allocation9] sm:$0xff] %v1413
    %1415 = vst [vmem:[#allocation10] sm:$0xff] %v1147
    // Predicated region
    $region66: #{_forward_impl.1} parent=1 // pred_check
      _
    $region67: #{_forward_impl.1} parent=1 // pred_check_branch
      %1417 = sbr.rel (0) target = $region69
    $region68: #{_forward_impl.1} parent=1 // pred_region
      %s1419 = ssub.s32 128, 128
      %1420 = vsyncadd [#allocation6], %s1419
      %s1422 = sshll.u32 [#allocation9], 4
      %s1423 = int_to_ptr.vmem [resolvable:$true] %s1422
      %1425 = dma.vmem_to_hbm [thread:$0]  %s1423, 128, %s14, [#allocation6]
    $region69: #{_forward_impl.1} parent=1 // pred_fallthru
      _
    // Predicated region
    $region70: #{_forward_impl.1} parent=1 // pred_check
      _
    $region71: #{_forward_impl.1} parent=1 // pred_check_branch
      %1427 = sbr.rel (0) target = $region73
    $region72: #{_forward_impl.1} parent=1 // pred_region
      %s1429 = ssub.s32 128, 128
      %1430 = vsyncadd [#allocation11], %s1429
      %s1432 = sshll.u32 [#allocation10], 4
      %s1433 = int_to_ptr.vmem [resolvable:$true] %s1432
      %1435 = dma.vmem_to_hbm [thread:$0]  %s1433, 128, %s15, [#allocation11]
    $region73: #{_forward_impl.1} parent=1 // pred_fallthru
      _
    // Predicated region
    $region74: #{_forward_impl.1} parent=1 // pred_check
      _
    $region75: #{_forward_impl.1} parent=1 // pred_check_branch
      %1437 = sbr.rel (0) target = $region77
    $region76: #{_forward_impl.1} parent=1 // pred_region
      %1438 = dma.done [#allocation6], 128
    $region77: #{_forward_impl.1} parent=1 // pred_fallthru
      _
    // Predicated region
    $region78: #{_forward_impl.1} parent=1 // pred_check
      _
    $region79: #{_forward_impl.1} parent=1 // pred_check_branch
      %1440 = sbr.rel (0) target = $region81
    $region80: #{_forward_impl.1} parent=1 // pred_region
      %1441 = dma.done [#allocation11], 128
    $region81: #{_forward_impl.1} parent=1 // pred_fallthru
      _
    %1442 = vsyncpa [#allocation5], 1
    %1443 = vsyncpa [#allocation8], 1
    %1444 = vsyncpa [#allocation6], 1
    %1445 = vsyncpa [#allocation11], 1

</llo_original>
